<compile_context>
chip_gen: v5e
topology: v5e:2x2
jax: 0.10.0
libtpu: 0.0.40
codegen_flags: <defaults>
</compile_context>

<pallas_src>
import functools

import jax
import jax.numpy as jnp
from jax import lax
from jax.experimental import pallas as pl
from jax.experimental.pallas import tpu as pltpu

NUM_INP = 13
HIDDEN = 64
MLP_HID = 16


def _round_up(x, m):
    return -(-x // m) * m


def ts_rnn_kernel(x_ref,                  # (T, B, 13) f32   raw input chunk (time-major)
                  wih1_ref,               # (13, 4H)  bf16
                  b1_ref,                 # (1, 4H)   f32
                  whh1_ref,               # (H, 4H)   bf16
                  w2_ref,                 # (2H, 4H)  bf16   [[Wih2];[Whh2]] fused
                  b2_ref,                 # (1, 4H)   f32
                  wm1_ref, bm1_ref,       # (H, 16) bf16, (1, 16) f32
                  wm2_ref, bm2_ref,       # (1, 16) f32,  (1, 1) f32
                  out_ref,                # (B, T)    f32    lane-dense output block
                  xg_s,                   # scratch (T, B, 4H) bf16   x@Wih1 + b1
                  hist_s,                 # scratch (T, B, H)  bf16   h2 history for MLP
                  h12_s,                  # scratch (B, 2H) f32       [h1 | h2] persistent
                  c1_s, c2_s):            # scratch (B, H) f32 each   cell states
    T, B, _ = x_ref.shape
    H = HIDDEN

    # New batch tile -> reset recurrent state (seq is the inner "arbitrary" grid axis).
    @pl.when(pl.program_id(1) == 0)
    def _():
        h12_s[...] = jnp.zeros_like(h12_s)
        c1_s[...] = jnp.zeros_like(c1_s)
        c2_s[...] = jnp.zeros_like(c2_s)

    # ---- Layer-1 input projection for the whole chunk (batched MXU matmuls) ----
    wih1 = wih1_ref[...]
    b1 = b1_ref[...]
    tproj = T
    while tproj * B > 4096 and tproj % 2 == 0:   # bound the f32 intermediate to ~4 MiB
        tproj //= 2
    for p in range(T // tproj):                  # small static loop over sub-slabs
        lo = p * tproj
        xb = x_ref[lo:lo + tproj].reshape(tproj * B, NUM_INP).astype(jnp.bfloat16)
        xg = jnp.dot(xb, wih1, preferred_element_type=jnp.float32) + b1
        xg_s[lo:lo + tproj] = xg.reshape(tproj, B, 4 * H).astype(jnp.bfloat16)

    # ---- Hoisted loop invariants ----
    whh1 = whh1_ref[...]                          # (H, 4H) bf16
    w2 = w2_ref[...]                              # (2H, 4H) bf16
    b2b = jnp.broadcast_to(b2_ref[...], (B, 4 * H))
    # Gate order [i, f, g, o].  sigmoid(x) = 0.5*tanh(0.5*x) + 0.5, so a single
    # lane-aligned tanh pass over all 4H lanes gives sigmoid on i/f/o and tanh on g.
    lane = lax.broadcasted_iota(jnp.int32, (1, 4 * H), 1)
    is_g = (lane >= 2 * H) & (lane < 3 * H)
    s_b = jnp.broadcast_to(jnp.where(is_g, 1.0, 0.5), (B, 4 * H))
    a_b = jnp.broadcast_to(jnp.where(is_g, 0.0, 0.5), (B, 4 * H))

    def gates_to_hc(g_pre, c):
        act = jnp.tanh(g_pre * s_b) * s_b + a_b   # [sig(i), sig(f), tanh(g), sig(o)]
        i_g = act[:, :H]
        f_g = act[:, H:2 * H]
        g_g = act[:, 2 * H:3 * H]
        o_g = act[:, 3 * H:]
        c_new = f_g * c + i_g * g_g
        return o_g * jnp.tanh(c_new), c_new

    # ---- Recurrent loop over the chunk (state lives in VMEM scratch) ----
    def step(t, carry):
        h1 = h12_s[:, :H]
        g1 = xg_s[t] + jnp.dot(h1.astype(jnp.bfloat16), whh1,
                               preferred_element_type=jnp.float32)
        h1, c1 = gates_to_hc(g1, c1_s[...])
        c1_s[...] = c1
        h12_s[:, :H] = h1                          # layer-2 LHS is now [h1_t | h2_{t-1}]
        g2 = jnp.dot(h12_s[...].astype(jnp.bfloat16), w2,
                     preferred_element_type=jnp.float32) + b2b
        h2, c2 = gates_to_hc(g2, c2_s[...])
        c2_s[...] = c2
        h12_s[:, H:] = h2                          # recurrent input for step t+1
        hist_s[t] = h2.astype(jnp.bfloat16)
        return carry

    unroll = max(u for u in (8, 4, 2, 1) if T % u == 0)
    _ = lax.fori_loop(0, T, step, 0, unroll=unroll)

    # ---- Batched per-timestep MLP over the whole chunk, lane-dense (B, T) store ----
    hist = hist_s[...].reshape(T * B, H)
    z = jnp.dot(hist, wm1_ref[...], preferred_element_type=jnp.float32) + bm1_ref[...]
    z = jnp.maximum(z, 0.0)                        # Dropout(eval) == identity
    y_tb = jnp.sum((z * wm2_ref[...]).reshape(T, B, MLP_HID), axis=-1) + bm2_ref[...]
    out_ref[...] = jnp.transpose(y_tb).astype(out_ref.dtype)   # (B, T)


@functools.partial(jax.jit, static_argnames=("block_t", "block_b"))
def ts_rnn_forward(inp, params, *, block_t=128, block_b=None):
    """inp: (batch, seq, NUM_INP) float32 -> (batch, seq) float32."""
    batch, seq, _ = inp.shape
    H = HIDDEN

    # --- pack parameters: bf16 MXU operands (f32 accumulate), f32 biases ---
    wih1 = params["wih1"].astype(jnp.bfloat16)                        # (13, 4H)
    whh1 = params["whh1"].astype(jnp.bfloat16)                        # (H, 4H)
    b1 = params["b1"].astype(jnp.float32)                             # (1, 4H)
    w2 = jnp.concatenate([params["wih2"], params["whh2"]],
                         axis=0).astype(jnp.bfloat16)                 # (2H, 4H)
    b2 = params["b2"].astype(jnp.float32)                             # (1, 4H)
    wm1 = params["wm1"].astype(jnp.bfloat16)                          # (H, 16)
    bm1 = params["bm1"].astype(jnp.float32)                           # (1, 16)
    wm2r = params["wm2"].T.astype(jnp.float32)                        # (1, 16)
    bm2 = params["bm2"].astype(jnp.float32)                           # (1, 1)

    # --- batch tiling: pad to sublane multiple, cap tiles at 256 rows so large
    #     batches produce several "parallel" grid tiles (megacore / v7x dual-TC). ---
    bp = _round_up(max(batch, 8), 8)
    if block_b is None:
        block_b = min(bp, 256)
    block_b = max(8, _round_up(min(block_b, bp), 8))
    bp = _round_up(bp, block_b)

    # --- seq chunking: lane-dense (block_b, block_t) out blocks require block_t % 128 == 0
    #     or a single chunk covering the whole (padded) sequence. ---
    if seq <= block_t:
        bt = _round_up(seq, 8)
        sp = bt
    else:
        bt = _round_up(block_t, 128)
        sp = _round_up(seq, bt)

    x_tm = jnp.transpose(inp, (1, 0, 2))                  # (seq, batch, 13) time-major
    x_tm = jnp.pad(x_tm, ((0, sp - seq), (0, bp - batch), (0, 0)))

    grid = (bp // block_b, sp // bt)
    wspec = lambda shape: pl.BlockSpec(shape, lambda b, s: (0, 0))

    out = pl.pallas_call(
        ts_rnn_kernel,
        out_shape=jax.ShapeDtypeStruct((bp, sp), jnp.float32),
        grid=grid,
        in_specs=[
            pl.BlockSpec((bt, block_b, NUM_INP), lambda b, s: (s, b, 0)),
            wspec((NUM_INP, 4 * H)),
            wspec((1, 4 * H)),
            wspec((H, 4 * H)),
            wspec((2 * H, 4 * H)),
            wspec((1, 4 * H)),
            wspec((H, MLP_HID)),
            wspec((1, MLP_HID)),
            wspec((1, MLP_HID)),
            wspec((1, 1)),
        ],
        out_specs=pl.BlockSpec((block_b, bt), lambda b, s: (b, s)),
        scratch_shapes=[
            pltpu.VMEM((bt, block_b, 4 * H), jnp.bfloat16),   # xg  (x@Wih1 + b1)
            pltpu.VMEM((bt, block_b, H), jnp.bfloat16),       # h2 history for the MLP
            pltpu.VMEM((block_b, 2 * H), jnp.float32),        # [h1 | h2]
            pltpu.VMEM((block_b, H), jnp.float32),            # c1
            pltpu.VMEM((block_b, H), jnp.float32),            # c2
        ],
        compiler_params=pltpu.CompilerParams(
            dimension_semantics=("parallel", "arbitrary"),
            vmem_limit_bytes=48 * 1024 * 1024),
    )(x_tm, wih1, b1, whh1, w2, b2, wm1, bm1, wm2r, bm2)

    return out[:batch, :seq]                              # (batch, seq), no transpose


def init_params(key):
    """Deterministic init mimicking PyTorch's uniform(-1/sqrt(fan), 1/sqrt(fan))."""
    ks = jax.random.split(key, 16)
    H = HIDDEN

    def u(k, shape, bound):
        return jax.random.uniform(k, shape, jnp.float32, -bound, bound)

    bl = 1.0 / jnp.sqrt(H)  # LSTM bound = 1/sqrt(hidden_size)
    # Layer 0 (input 13)
    w_ih_l0 = u(ks[0], (4 * H, NUM_INP), bl)
    w_hh_l0 = u(ks[1], (4 * H, H), bl)
    b_ih_l0 = u(ks[2], (4 * H,), bl)
    b_hh_l0 = u(ks[3], (4 * H,), bl)
    # Layer 1 (input 64)
    w_ih_l1 = u(ks[4], (4 * H, H), bl)
    w_hh_l1 = u(ks[5], (4 * H, H), bl)
    b_ih_l1 = u(ks[6], (4 * H,), bl)
    b_hh_l1 = u(ks[7], (4 * H,), bl)
    # MLP
    b1m = 1.0 / jnp.sqrt(H)
    w_m1 = u(ks[8], (MLP_HID, H), b1m)
    bias_m1 = u(ks[9], (MLP_HID,), b1m)
    b2m = 1.0 / jnp.sqrt(MLP_HID)
    w_m2 = u(ks[10], (1, MLP_HID), b2m)
    bias_m2 = u(ks[11], (1,), b2m)

    return {
        "wih1": w_ih_l0.T, "whh1": w_hh_l0.T,
        "b1": (b_ih_l0 + b_hh_l0).reshape(1, 4 * H),
        "wih2": w_ih_l1.T, "whh2": w_hh_l1.T,
        "b2": (b_ih_l1 + b_hh_l1).reshape(1, 4 * H),
        "wm1": w_m1.T, "bm1": bias_m1.reshape(1, MLP_HID),
        "wm2": w_m2.T, "bm2": bias_m2.reshape(1, 1),
    }


def ts_rnn_reference(inp, params):
    """Pure-JAX f32 reference (lax.scan LSTM, PyTorch gate order [i,f,g,o])."""
    H = HIDDEN
    x_tm = jnp.transpose(inp, (1, 0, 2))
    batch = inp.shape[0]

    def cell(x_t, h, c, wih, whh, b):
        g = x_t @ wih + h @ whh + b
        i = jax.nn.sigmoid(g[:, :H])
        f = jax.nn.sigmoid(g[:, H:2 * H])
        gg = jnp.tanh(g[:, 2 * H:3 * H])
        o = jax.nn.sigmoid(g[:, 3 * H:])
        c_new = f * c + i * gg
        return o * jnp.tanh(c_new), c_new

    def step(carry, x_t):
        h1, c1, h2, c2 = carry
        h1, c1 = cell(x_t, h1, c1, params["wih1"], params["whh1"], params["b1"])
        h2, c2 = cell(h1, h2, c2, params["wih2"], params["whh2"], params["b2"])
        z = jnp.maximum(h2 @ params["wm1"] + params["bm1"], 0.0)
        y = z @ params["wm2"] + params["bm2"]
        return (h1, c1, h2, c2), y[:, 0]

    zeros = jnp.zeros((batch, H), jnp.float32)
    _, ys = lax.scan(step, (zeros, zeros, zeros, zeros), x_tm)
    return jnp.transpose(ys, (1, 0))


if __name__ == "__main__":
    key = jax.random.PRNGKey(0)
    k_p, k_x, k_x2, k_x3 = jax.random.split(key, 4)

    params = init_params(k_p)

    # Case 1: batch=2, seq=8 -> single seq chunk, single batch tile.
    x = jax.random.normal(k_x, (2, 8, NUM_INP), jnp.float32)
    out = jax.block_until_ready(ts_rnn_forward(x, params))
    ref = ts_rnn_reference(x, params)
    assert out.shape == (2, 8), out.shape
    assert jnp.allclose(out, ref, rtol=2e-2, atol=2e-2), (out, ref)

    # Case 2: odd batch / seq (exercises batch padding to 8 and seq padding).
    x2 = jax.random.normal(k_x2, (3, 10, NUM_INP), jnp.float32)
    out2 = jax.block_until_ready(ts_rnn_forward(x2, params))
    ref2 = ts_rnn_reference(x2, params)
    assert out2.shape == (3, 10), out2.shape
    assert jnp.allclose(out2, ref2, rtol=2e-2, atol=2e-2), (out2, ref2)

    # Case 3: multiple batch tiles AND multiple seq chunks (state carried across chunks,
    # per-tile reset) -- exercises the tiled / megacore-parallel path.
    x3 = jax.random.normal(k_x3, (24, 300, NUM_INP), jnp.float32)
    out3 = jax.block_until_ready(ts_rnn_forward(x3, params, block_t=128, block_b=8))
    ref3 = ts_rnn_reference(x3, params)
    assert out3.shape == (24, 300), out3.shape
    assert jnp.allclose(out3, ref3, rtol=3e-2, atol=3e-2), (out3, ref3)

    print("KERNEL_OK")
</pallas_src>

<mosaic_0001>
module attributes {stable_mosaic.version = 11 : i64} {
  func.func @ts_rnn_kernel(%arg0: i32, %arg1: i32, %arg2: memref<8x8x13xf32, #tpu.memory_space<vmem>>, %arg3: memref<13x256xbf16, #tpu.memory_space<vmem>>, %arg4: memref<1x256xf32, #tpu.memory_space<vmem>>, %arg5: memref<64x256xbf16, #tpu.memory_space<vmem>>, %arg6: memref<128x256xbf16, #tpu.memory_space<vmem>>, %arg7: memref<1x256xf32, #tpu.memory_space<vmem>>, %arg8: memref<64x16xbf16, #tpu.memory_space<vmem>>, %arg9: memref<1x16xf32, #tpu.memory_space<vmem>>, %arg10: memref<1x16xf32, #tpu.memory_space<vmem>>, %arg11: memref<1x1xf32, #tpu.memory_space<vmem>>, %arg12: memref<8x8xf32, #tpu.memory_space<vmem>>, %arg13: memref<8x8x256xbf16, #tpu.memory_space<vmem>>, %arg14: memref<8x8x64xbf16, #tpu.memory_space<vmem>>, %arg15: memref<8x128xf32, #tpu.memory_space<vmem>>, %arg16: memref<8x64xf32, #tpu.memory_space<vmem>>, %arg17: memref<8x64xf32, #tpu.memory_space<vmem>>) attributes {dimension_semantics = [#tpu.dimension_semantics<parallel>, #tpu.dimension_semantics<arbitrary>], iteration_bounds = array<i64: 1, 1>, scalar_prefetch = 0 : i64, scratch_operands = 5 : i64, tpu.core_type = #tpu.core_type<tc>, window_params = [{transform_indices = @transform_0, window_bounds = array<i64: 8, 8, 13>}, {pipeline_mode = #tpu.pipeline_mode<synchronous>, transform_indices = @transform_1, window_bounds = array<i64: 13, 256>}, {pipeline_mode = #tpu.pipeline_mode<synchronous>, transform_indices = @transform_2, window_bounds = array<i64: 1, 256>}, {pipeline_mode = #tpu.pipeline_mode<synchronous>, transform_indices = @transform_3, window_bounds = array<i64: 64, 256>}, {pipeline_mode = #tpu.pipeline_mode<synchronous>, transform_indices = @transform_4, window_bounds = array<i64: 128, 256>}, {pipeline_mode = #tpu.pipeline_mode<synchronous>, transform_indices = @transform_5, window_bounds = array<i64: 1, 256>}, {pipeline_mode = #tpu.pipeline_mode<synchronous>, transform_indices = @transform_6, window_bounds = array<i64: 64, 16>}, {pipeline_mode = #tpu.pipeline_mode<synchronous>, transform_indices = @transform_7, window_bounds = array<i64: 1, 16>}, {pipeline_mode = #tpu.pipeline_mode<synchronous>, transform_indices = @transform_8, window_bounds = array<i64: 1, 16>}, {pipeline_mode = #tpu.pipeline_mode<synchronous>, transform_indices = @transform_9, window_bounds = array<i64: 1, 1>}, {transform_indices = @transform_10, window_bounds = array<i64: 8, 8>}]} {
    %c0_i32 = arith.constant 0 : i32
    %0 = arith.cmpi eq, %arg1, %c0_i32 : i32
    %1 = arith.extui %0 : i1 to i32
    %c0_i32_0 = arith.constant 0 : i32
    %2 = arith.cmpi ne, %1, %c0_i32_0 : i32
    scf.if %2 {
      %cst_212 = arith.constant 0.000000e+00 : f32
      %446 = vector.broadcast %cst_212 : f32 to vector<8x128xf32>
      %c0_213 = arith.constant 0 : index
      %c0_214 = arith.constant 0 : index
      %447 = vector.load %arg15[%c0_213, %c0_214] : memref<8x128xf32, #tpu.memory_space<vmem>>, vector<8x128xf32>
      tpu.vector_store %arg15[%c0_213, %c0_214], %446 {strides = array<i32>} : memref<8x128xf32, #tpu.memory_space<vmem>>, vector<8x128xf32>,
      %cst_215 = arith.constant 0.000000e+00 : f32
      %448 = vector.broadcast %cst_215 : f32 to vector<8x64xf32>
      %c0_216 = arith.constant 0 : index
      %c0_217 = arith.constant 0 : index
      %449 = vector.load %arg16[%c0_216, %c0_217] : memref<8x64xf32, #tpu.memory_space<vmem>>, vector<8x64xf32>
      tpu.vector_store %arg16[%c0_216, %c0_217], %448 {strides = array<i32>} : memref<8x64xf32, #tpu.memory_space<vmem>>, vector<8x64xf32>,
      %cst_218 = arith.constant 0.000000e+00 : f32
      %450 = vector.broadcast %cst_218 : f32 to vector<8x64xf32>
      %c0_219 = arith.constant 0 : index
      %c0_220 = arith.constant 0 : index
      %451 = vector.load %arg17[%c0_219, %c0_220] : memref<8x64xf32, #tpu.memory_space<vmem>>, vector<8x64xf32>
      tpu.vector_store %arg17[%c0_219, %c0_220], %450 {strides = array<i32>} : memref<8x64xf32, #tpu.memory_space<vmem>>, vector<8x64xf32>,
    } else {
    }
    %c0 = arith.constant 0 : index
    %c0_1 = arith.constant 0 : index
    %3 = vector.load %arg3[%c0, %c0_1] : memref<13x256xbf16, #tpu.memory_space<vmem>>, vector<13x256xbf16>
    %c0_2 = arith.constant 0 : index
    %c0_3 = arith.constant 0 : index
    %4 = vector.load %arg4[%c0_2, %c0_3] : memref<1x256xf32, #tpu.memory_space<vmem>>, vector<1x256xf32>
    %c0_4 = arith.constant 0 : index
    %c0_5 = arith.constant 0 : index
    %c0_6 = arith.constant 0 : index
    %5 = vector.load %arg2[%c0_4, %c0_5, %c0_6] : memref<8x8x13xf32, #tpu.memory_space<vmem>>, vector<8x8x13xf32>
    %6 = vector.shape_cast %5 : vector<8x8x13xf32> to vector<64x13xf32>
    %7 = arith.truncf %6 : vector<64x13xf32> to vector<64x13xbf16>
    %cst = arith.constant dense<0.000000e+00> : vector<64x256xf32>
    %8 = tpu.matmul %7, %3, %cst {dimension_numbers = #tpu.dot_dimension_numbers<[1], [0], [0], [1], [0, 0, 1, 1], [], []>} : vector<64x13xbf16>, vector<13x256xbf16>, vector<64x256xf32> -> vector<64x256xf32>
    %9 = vector.broadcast %4 : vector<1x256xf32> to vector<64x256xf32>
    %10 = arith.addf %8, %9 : vector<64x256xf32>
    %11 = vector.shape_cast %10 : vector<64x256xf32> to vector<8x8x256xf32>
    %12 = arith.truncf %11 : vector<8x8x256xf32> to vector<8x8x256xbf16>
    %c0_7 = arith.constant 0 : index
    %c0_8 = arith.constant 0 : index
    %c0_9 = arith.constant 0 : index
    %13 = vector.load %arg13[%c0_7, %c0_8, %c0_9] : memref<8x8x256xbf16, #tpu.memory_space<vmem>>, vector<8x8x256xbf16>
    tpu.vector_store %arg13[%c0_7, %c0_8, %c0_9], %12 {strides = array<i32>} : memref<8x8x256xbf16, #tpu.memory_space<vmem>>, vector<8x8x256xbf16>,
    %c0_10 = arith.constant 0 : index
    %c0_11 = arith.constant 0 : index
    %14 = vector.load %arg5[%c0_10, %c0_11] : memref<64x256xbf16, #tpu.memory_space<vmem>>, vector<64x256xbf16>
    %c0_12 = arith.constant 0 : index
    %c0_13 = arith.constant 0 : index
    %15 = vector.load %arg6[%c0_12, %c0_13] : memref<128x256xbf16, #tpu.memory_space<vmem>>, vector<128x256xbf16>
    %c0_14 = arith.constant 0 : index
    %c0_15 = arith.constant 0 : index
    %16 = vector.load %arg7[%c0_14, %c0_15] : memref<1x256xf32, #tpu.memory_space<vmem>>, vector<1x256xf32>
    %17 = vector.shape_cast %16 : vector<1x256xf32> to vector<1x256xf32>
    %18 = vector.broadcast %17 : vector<1x256xf32> to vector<8x256xf32>
    %19 = tpu.iota {dimensions = array<i32: 1>} : vector<1x256xi32>
    %c128_i32 = arith.constant 128 : i32
    %20 = vector.broadcast %c128_i32 : i32 to vector<1x256xi32>
    %21 = arith.cmpi sge, %19, %20 : vector<1x256xi32>
    %c192_i32 = arith.constant 192 : i32
    %22 = vector.broadcast %c192_i32 : i32 to vector<1x256xi32>
    %23 = arith.cmpi slt, %19, %22 : vector<1x256xi32>
    %24 = arith.andi %21, %23 : vector<1x256xi1>
    %cst_16 = arith.constant 1.000000e+00 : f32
    %cst_17 = arith.constant 5.000000e-01 : f32
    %25 = vector.broadcast %cst_16 : f32 to vector<1x256xf32>
    %26 = vector.broadcast %cst_17 : f32 to vector<1x256xf32>
    %27 = arith.select %24, %25, %26 : vector<1x256xi1>, vector<1x256xf32>
    %28 = vector.shape_cast %27 : vector<1x256xf32> to vector<1x256xf32>
    %29 = vector.broadcast %28 : vector<1x256xf32> to vector<8x256xf32>
    %cst_18 = arith.constant 0.000000e+00 : f32
    %cst_19 = arith.constant 5.000000e-01 : f32
    %30 = vector.broadcast %cst_18 : f32 to vector<1x256xf32>
    %31 = vector.broadcast %cst_19 : f32 to vector<1x256xf32>
    %32 = arith.select %24, %30, %31 : vector<1x256xi1>, vector<1x256xf32>
    %33 = vector.shape_cast %32 : vector<1x256xf32> to vector<1x256xf32>
    %34 = vector.broadcast %33 : vector<1x256xf32> to vector<8x256xf32>
    %c0_i32_20 = arith.constant 0 : i32
    %c0_21 = arith.constant 0 : index
    %c0_22 = arith.constant 0 : index
    %35 = vector.load %arg15[%c0_21, %c0_22] : memref<8x128xf32, #tpu.memory_space<vmem>>, vector<8x64xf32>
    %36 = arith.index_cast %c0_i32_20 : i32 to index
    %c0_23 = arith.constant 0 : index
    %c0_24 = arith.constant 0 : index
    %37 = vector.load %arg13[%36, %c0_23, %c0_24] : memref<8x8x256xbf16, #tpu.memory_space<vmem>>, vector<1x8x256xbf16>
    %38 = vector.shape_cast %37 : vector<1x8x256xbf16> to vector<8x256xbf16>
    %39 = arith.truncf %35 : vector<8x64xf32> to vector<8x64xbf16>
    %cst_25 = arith.constant dense<0.000000e+00> : vector<8x256xf32>
    %40 = tpu.matmul %39, %14, %cst_25 {dimension_numbers = #tpu.dot_dimension_numbers<[1], [0], [0], [1], [0, 0, 1, 1], [], []>} : vector<8x64xbf16>, vector<64x256xbf16>, vector<8x256xf32> -> vector<8x256xf32>
    %41 = arith.extf %38 : vector<8x256xbf16> to vector<8x256xf32>
    %42 = arith.addf %41, %40 : vector<8x256xf32>
    %c0_26 = arith.constant 0 : index
    %c0_27 = arith.constant 0 : index
    %43 = vector.load %arg16[%c0_26, %c0_27] : memref<8x64xf32, #tpu.memory_space<vmem>>, vector<8x64xf32>
    %44 = arith.mulf %42, %29 : vector<8x256xf32>
    %45 = math.tanh %44 : vector<8x256xf32>
    %46 = arith.mulf %45, %29 : vector<8x256xf32>
    %47 = arith.addf %46, %34 : vector<8x256xf32>
    %48 = vector.extract_strided_slice %47 {offsets = [0, 0], sizes = [8, 64], strides = [1, 1]} : vector<8x256xf32> to vector<8x64xf32>
    %49 = vector.extract_strided_slice %47 {offsets = [0, 64], sizes = [8, 64], strides = [1, 1]} : vector<8x256xf32> to vector<8x64xf32>
    %50 = vector.extract_strided_slice %47 {offsets = [0, 128], sizes = [8, 64], strides = [1, 1]} : vector<8x256xf32> to vector<8x64xf32>
    %51 = vector.extract_strided_slice %47 {offsets = [0, 192], sizes = [8, 64], strides = [1, 1]} : vector<8x256xf32> to vector<8x64xf32>
    %52 = arith.mulf %49, %43 : vector<8x64xf32>
    %53 = arith.mulf %48, %50 : vector<8x64xf32>
    %54 = arith.addf %52, %53 : vector<8x64xf32>
    %55 = math.tanh %54 : vector<8x64xf32>
    %56 = arith.mulf %51, %55 : vector<8x64xf32>
    %c0_28 = arith.constant 0 : index
    %c0_29 = arith.constant 0 : index
    %57 = vector.load %arg16[%c0_28, %c0_29] : memref<8x64xf32, #tpu.memory_space<vmem>>, vector<8x64xf32>
    tpu.vector_store %arg16[%c0_28, %c0_29], %54 {strides = array<i32>} : memref<8x64xf32, #tpu.memory_space<vmem>>, vector<8x64xf32>,
    %c0_30 = arith.constant 0 : index
    %c0_31 = arith.constant 0 : index
    %58 = vector.load %arg15[%c0_30, %c0_31] : memref<8x128xf32, #tpu.memory_space<vmem>>, vector<8x64xf32>
    tpu.vector_store %arg15[%c0_30, %c0_31], %56 {strides = array<i32>} : memref<8x128xf32, #tpu.memory_space<vmem>>, vector<8x64xf32>,
    %c0_32 = arith.constant 0 : index
    %c0_33 = arith.constant 0 : index
    %59 = vector.load %arg15[%c0_32, %c0_33] : memref<8x128xf32, #tpu.memory_space<vmem>>, vector<8x128xf32>
    %60 = arith.truncf %59 : vector<8x128xf32> to vector<8x128xbf16>
    %cst_34 = arith.constant dense<0.000000e+00> : vector<8x256xf32>
    %61 = tpu.matmul %60, %15, %cst_34 {dimension_numbers = #tpu.dot_dimension_numbers<[1], [0], [0], [1], [0, 0, 1, 1], [], []>} : vector<8x128xbf16>, vector<128x256xbf16>, vector<8x256xf32> -> vector<8x256xf32>
    %62 = arith.addf %61, %18 : vector<8x256xf32>
    %c0_35 = arith.constant 0 : index
    %c0_36 = arith.constant 0 : index
    %63 = vector.load %arg17[%c0_35, %c0_36] : memref<8x64xf32, #tpu.memory_space<vmem>>, vector<8x64xf32>
    %64 = arith.mulf %62, %29 : vector<8x256xf32>
    %65 = math.tanh %64 : vector<8x256xf32>
    %66 = arith.mulf %65, %29 : vector<8x256xf32>
    %67 = arith.addf %66, %34 : vector<8x256xf32>
    %68 = vector.extract_strided_slice %67 {offsets = [0, 0], sizes = [8, 64], strides = [1, 1]} : vector<8x256xf32> to vector<8x64xf32>
    %69 = vector.extract_strided_slice %67 {offsets = [0, 64], sizes = [8, 64], strides = [1, 1]} : vector<8x256xf32> to vector<8x64xf32>
    %70 = vector.extract_strided_slice %67 {offsets = [0, 128], sizes = [8, 64], strides = [1, 1]} : vector<8x256xf32> to vector<8x64xf32>
    %71 = vector.extract_strided_slice %67 {offsets = [0, 192], sizes = [8, 64], strides = [1, 1]} : vector<8x256xf32> to vector<8x64xf32>
    %72 = arith.mulf %69, %63 : vector<8x64xf32>
    %73 = arith.mulf %68, %70 : vector<8x64xf32>
    %74 = arith.addf %72, %73 : vector<8x64xf32>
    %75 = math.tanh %74 : vector<8x64xf32>
    %76 = arith.mulf %71, %75 : vector<8x64xf32>
    %c0_37 = arith.constant 0 : index
    %c0_38 = arith.constant 0 : index
    %77 = vector.load %arg17[%c0_37, %c0_38] : memref<8x64xf32, #tpu.memory_space<vmem>>, vector<8x64xf32>
    tpu.vector_store %arg17[%c0_37, %c0_38], %74 {strides = array<i32>} : memref<8x64xf32, #tpu.memory_space<vmem>>, vector<8x64xf32>,
    %c0_39 = arith.constant 0 : index
    %c64 = arith.constant 64 : index
    %78 = vector.load %arg15[%c0_39, %c64] : memref<8x128xf32, #tpu.memory_space<vmem>>, vector<8x64xf32>
    tpu.vector_store %arg15[%c0_39, %c64], %76 {strides = array<i32>} : memref<8x128xf32, #tpu.memory_space<vmem>>, vector<8x64xf32>,
    %79 = arith.truncf %76 : vector<8x64xf32> to vector<8x64xbf16>
    %80 = arith.index_cast %c0_i32_20 : i32 to index
    %c0_40 = arith.constant 0 : index
    %c0_41 = arith.constant 0 : index
    %81 = vector.load %arg14[%80, %c0_40, %c0_41] : memref<8x8x64xbf16, #tpu.memory_space<vmem>>, vector<1x8x64xbf16>
    %82 = vector.shape_cast %81 : vector<1x8x64xbf16> to vector<8x64xbf16>
    %83 = vector.shape_cast %79 : vector<8x64xbf16> to vector<1x8x64xbf16>
    tpu.vector_store %arg14[%80, %c0_40, %c0_41], %83 {strides = array<i32>} : memref<8x8x64xbf16, #tpu.memory_space<vmem>>, vector<1x8x64xbf16>,
    %c1_i32 = arith.constant 1 : i32
    %c0_42 = arith.constant 0 : index
    %c0_43 = arith.constant 0 : index
    %84 = vector.load %arg15[%c0_42, %c0_43] : memref<8x128xf32, #tpu.memory_space<vmem>>, vector<8x64xf32>
    %85 = arith.index_cast %c1_i32 : i32 to index
    %c0_44 = arith.constant 0 : index
    %c0_45 = arith.constant 0 : index
    %86 = vector.load %arg13[%85, %c0_44, %c0_45] : memref<8x8x256xbf16, #tpu.memory_space<vmem>>, vector<1x8x256xbf16>
    %87 = vector.shape_cast %86 : vector<1x8x256xbf16> to vector<8x256xbf16>
    %88 = arith.truncf %84 : vector<8x64xf32> to vector<8x64xbf16>
    %cst_46 = arith.constant dense<0.000000e+00> : vector<8x256xf32>
    %89 = tpu.matmul %88, %14, %cst_46 {dimension_numbers = #tpu.dot_dimension_numbers<[1], [0], [0], [1], [0, 0, 1, 1], [], []>} : vector<8x64xbf16>, vector<64x256xbf16>, vector<8x256xf32> -> vector<8x256xf32>
    %90 = arith.extf %87 : vector<8x256xbf16> to vector<8x256xf32>
    %91 = arith.addf %90, %89 : vector<8x256xf32>
    %c0_47 = arith.constant 0 : index
    %c0_48 = arith.constant 0 : index
    %92 = vector.load %arg16[%c0_47, %c0_48] : memref<8x64xf32, #tpu.memory_space<vmem>>, vector<8x64xf32>
    %93 = arith.mulf %91, %29 : vector<8x256xf32>
    %94 = math.tanh %93 : vector<8x256xf32>
    %95 = arith.mulf %94, %29 : vector<8x256xf32>
    %96 = arith.addf %95, %34 : vector<8x256xf32>
    %97 = vector.extract_strided_slice %96 {offsets = [0, 0], sizes = [8, 64], strides = [1, 1]} : vector<8x256xf32> to vector<8x64xf32>
    %98 = vector.extract_strided_slice %96 {offsets = [0, 64], sizes = [8, 64], strides = [1, 1]} : vector<8x256xf32> to vector<8x64xf32>
    %99 = vector.extract_strided_slice %96 {offsets = [0, 128], sizes = [8, 64], strides = [1, 1]} : vector<8x256xf32> to vector<8x64xf32>
    %100 = vector.extract_strided_slice %96 {offsets = [0, 192], sizes = [8, 64], strides = [1, 1]} : vector<8x256xf32> to vector<8x64xf32>
    %101 = arith.mulf %98, %92 : vector<8x64xf32>
    %102 = arith.mulf %97, %99 : vector<8x64xf32>
    %103 = arith.addf %101, %102 : vector<8x64xf32>
    %104 = math.tanh %103 : vector<8x64xf32>
    %105 = arith.mulf %100, %104 : vector<8x64xf32>
    %c0_49 = arith.constant 0 : index
    %c0_50 = arith.constant 0 : index
    %106 = vector.load %arg16[%c0_49, %c0_50] : memref<8x64xf32, #tpu.memory_space<vmem>>, vector<8x64xf32>
    tpu.vector_store %arg16[%c0_49, %c0_50], %103 {strides = array<i32>} : memref<8x64xf32, #tpu.memory_space<vmem>>, vector<8x64xf32>,
    %c0_51 = arith.constant 0 : index
    %c0_52 = arith.constant 0 : index
    %107 = vector.load %arg15[%c0_51, %c0_52] : memref<8x128xf32, #tpu.memory_space<vmem>>, vector<8x64xf32>
    tpu.vector_store %arg15[%c0_51, %c0_52], %105 {strides = array<i32>} : memref<8x128xf32, #tpu.memory_space<vmem>>, vector<8x64xf32>,
    %c0_53 = arith.constant 0 : index
    %c0_54 = arith.constant 0 : index
    %108 = vector.load %arg15[%c0_53, %c0_54] : memref<8x128xf32, #tpu.memory_space<vmem>>, vector<8x128xf32>
    %109 = arith.truncf %108 : vector<8x128xf32> to vector<8x128xbf16>
    %cst_55 = arith.constant dense<0.000000e+00> : vector<8x256xf32>
    %110 = tpu.matmul %109, %15, %cst_55 {dimension_numbers = #tpu.dot_dimension_numbers<[1], [0], [0], [1], [0, 0, 1, 1], [], []>} : vector<8x128xbf16>, vector<128x256xbf16>, vector<8x256xf32> -> vector<8x256xf32>
    %111 = arith.addf %110, %18 : vector<8x256xf32>
    %c0_56 = arith.constant 0 : index
    %c0_57 = arith.constant 0 : index
    %112 = vector.load %arg17[%c0_56, %c0_57] : memref<8x64xf32, #tpu.memory_space<vmem>>, vector<8x64xf32>
    %113 = arith.mulf %111, %29 : vector<8x256xf32>
    %114 = math.tanh %113 : vector<8x256xf32>
    %115 = arith.mulf %114, %29 : vector<8x256xf32>
    %116 = arith.addf %115, %34 : vector<8x256xf32>
    %117 = vector.extract_strided_slice %116 {offsets = [0, 0], sizes = [8, 64], strides = [1, 1]} : vector<8x256xf32> to vector<8x64xf32>
    %118 = vector.extract_strided_slice %116 {offsets = [0, 64], sizes = [8, 64], strides = [1, 1]} : vector<8x256xf32> to vector<8x64xf32>
    %119 = vector.extract_strided_slice %116 {offsets = [0, 128], sizes = [8, 64], strides = [1, 1]} : vector<8x256xf32> to vector<8x64xf32>
    %120 = vector.extract_strided_slice %116 {offsets = [0, 192], sizes = [8, 64], strides = [1, 1]} : vector<8x256xf32> to vector<8x64xf32>
    %121 = arith.mulf %118, %112 : vector<8x64xf32>
    %122 = arith.mulf %117, %119 : vector<8x64xf32>
    %123 = arith.addf %121, %122 : vector<8x64xf32>
    %124 = math.tanh %123 : vector<8x64xf32>
    %125 = arith.mulf %120, %124 : vector<8x64xf32>
    %c0_58 = arith.constant 0 : index
    %c0_59 = arith.constant 0 : index
    %126 = vector.load %arg17[%c0_58, %c0_59] : memref<8x64xf32, #tpu.memory_space<vmem>>, vector<8x64xf32>
    tpu.vector_store %arg17[%c0_58, %c0_59], %123 {strides = array<i32>} : memref<8x64xf32, #tpu.memory_space<vmem>>, vector<8x64xf32>,
    %c0_60 = arith.constant 0 : index
    %c64_61 = arith.constant 64 : index
    %127 = vector.load %arg15[%c0_60, %c64_61] : memref<8x128xf32, #tpu.memory_space<vmem>>, vector<8x64xf32>
    tpu.vector_store %arg15[%c0_60, %c64_61], %125 {strides = array<i32>} : memref<8x128xf32, #tpu.memory_space<vmem>>, vector<8x64xf32>,
    %128 = arith.truncf %125 : vector<8x64xf32> to vector<8x64xbf16>
    %129 = arith.index_cast %c1_i32 : i32 to index
    %c0_62 = arith.constant 0 : index
    %c0_63 = arith.constant 0 : index
    %130 = vector.load %arg14[%129, %c0_62, %c0_63] : memref<8x8x64xbf16, #tpu.memory_space<vmem>>, vector<1x8x64xbf16>
    %131 = vector.shape_cast %130 : vector<1x8x64xbf16> to vector<8x64xbf16>
    %132 = vector.shape_cast %128 : vector<8x64xbf16> to vector<1x8x64xbf16>
    tpu.vector_store %arg14[%129, %c0_62, %c0_63], %132 {strides = array<i32>} : memref<8x8x64xbf16, #tpu.memory_space<vmem>>, vector<1x8x64xbf16>,
    %c2_i32 = arith.constant 2 : i32
    %c0_64 = arith.constant 0 : index
    %c0_65 = arith.constant 0 : index
    %133 = vector.load %arg15[%c0_64, %c0_65] : memref<8x128xf32, #tpu.memory_space<vmem>>, vector<8x64xf32>
    %134 = arith.index_cast %c2_i32 : i32 to index
    %c0_66 = arith.constant 0 : index
    %c0_67 = arith.constant 0 : index
    %135 = vector.load %arg13[%134, %c0_66, %c0_67] : memref<8x8x256xbf16, #tpu.memory_space<vmem>>, vector<1x8x256xbf16>
    %136 = vector.shape_cast %135 : vector<1x8x256xbf16> to vector<8x256xbf16>
    %137 = arith.truncf %133 : vector<8x64xf32> to vector<8x64xbf16>
    %cst_68 = arith.constant dense<0.000000e+00> : vector<8x256xf32>
    %138 = tpu.matmul %137, %14, %cst_68 {dimension_numbers = #tpu.dot_dimension_numbers<[1], [0], [0], [1], [0, 0, 1, 1], [], []>} : vector<8x64xbf16>, vector<64x256xbf16>, vector<8x256xf32> -> vector<8x256xf32>
    %139 = arith.extf %136 : vector<8x256xbf16> to vector<8x256xf32>
    %140 = arith.addf %139, %138 : vector<8x256xf32>
    %c0_69 = arith.constant 0 : index
    %c0_70 = arith.constant 0 : index
    %141 = vector.load %arg16[%c0_69, %c0_70] : memref<8x64xf32, #tpu.memory_space<vmem>>, vector<8x64xf32>
    %142 = arith.mulf %140, %29 : vector<8x256xf32>
    %143 = math.tanh %142 : vector<8x256xf32>
    %144 = arith.mulf %143, %29 : vector<8x256xf32>
    %145 = arith.addf %144, %34 : vector<8x256xf32>
    %146 = vector.extract_strided_slice %145 {offsets = [0, 0], sizes = [8, 64], strides = [1, 1]} : vector<8x256xf32> to vector<8x64xf32>
    %147 = vector.extract_strided_slice %145 {offsets = [0, 64], sizes = [8, 64], strides = [1, 1]} : vector<8x256xf32> to vector<8x64xf32>
    %148 = vector.extract_strided_slice %145 {offsets = [0, 128], sizes = [8, 64], strides = [1, 1]} : vector<8x256xf32> to vector<8x64xf32>
    %149 = vector.extract_strided_slice %145 {offsets = [0, 192], sizes = [8, 64], strides = [1, 1]} : vector<8x256xf32> to vector<8x64xf32>
    %150 = arith.mulf %147, %141 : vector<8x64xf32>
    %151 = arith.mulf %146, %148 : vector<8x64xf32>
    %152 = arith.addf %150, %151 : vector<8x64xf32>
    %153 = math.tanh %152 : vector<8x64xf32>
    %154 = arith.mulf %149, %153 : vector<8x64xf32>
    %c0_71 = arith.constant 0 : index
    %c0_72 = arith.constant 0 : index
    %155 = vector.load %arg16[%c0_71, %c0_72] : memref<8x64xf32, #tpu.memory_space<vmem>>, vector<8x64xf32>
    tpu.vector_store %arg16[%c0_71, %c0_72], %152 {strides = array<i32>} : memref<8x64xf32, #tpu.memory_space<vmem>>, vector<8x64xf32>,
    %c0_73 = arith.constant 0 : index
    %c0_74 = arith.constant 0 : index
    %156 = vector.load %arg15[%c0_73, %c0_74] : memref<8x128xf32, #tpu.memory_space<vmem>>, vector<8x64xf32>
    tpu.vector_store %arg15[%c0_73, %c0_74], %154 {strides = array<i32>} : memref<8x128xf32, #tpu.memory_space<vmem>>, vector<8x64xf32>,
    %c0_75 = arith.constant 0 : index
    %c0_76 = arith.constant 0 : index
    %157 = vector.load %arg15[%c0_75, %c0_76] : memref<8x128xf32, #tpu.memory_space<vmem>>, vector<8x128xf32>
    %158 = arith.truncf %157 : vector<8x128xf32> to vector<8x128xbf16>
    %cst_77 = arith.constant dense<0.000000e+00> : vector<8x256xf32>
    %159 = tpu.matmul %158, %15, %cst_77 {dimension_numbers = #tpu.dot_dimension_numbers<[1], [0], [0], [1], [0, 0, 1, 1], [], []>} : vector<8x128xbf16>, vector<128x256xbf16>, vector<8x256xf32> -> vector<8x256xf32>
    %160 = arith.addf %159, %18 : vector<8x256xf32>
    %c0_78 = arith.constant 0 : index
    %c0_79 = arith.constant 0 : index
    %161 = vector.load %arg17[%c0_78, %c0_79] : memref<8x64xf32, #tpu.memory_space<vmem>>, vector<8x64xf32>
    %162 = arith.mulf %160, %29 : vector<8x256xf32>
    %163 = math.tanh %162 : vector<8x256xf32>
    %164 = arith.mulf %163, %29 : vector<8x256xf32>
    %165 = arith.addf %164, %34 : vector<8x256xf32>
    %166 = vector.extract_strided_slice %165 {offsets = [0, 0], sizes = [8, 64], strides = [1, 1]} : vector<8x256xf32> to vector<8x64xf32>
    %167 = vector.extract_strided_slice %165 {offsets = [0, 64], sizes = [8, 64], strides = [1, 1]} : vector<8x256xf32> to vector<8x64xf32>
    %168 = vector.extract_strided_slice %165 {offsets = [0, 128], sizes = [8, 64], strides = [1, 1]} : vector<8x256xf32> to vector<8x64xf32>
    %169 = vector.extract_strided_slice %165 {offsets = [0, 192], sizes = [8, 64], strides = [1, 1]} : vector<8x256xf32> to vector<8x64xf32>
    %170 = arith.mulf %167, %161 : vector<8x64xf32>
    %171 = arith.mulf %166, %168 : vector<8x64xf32>
    %172 = arith.addf %170, %171 : vector<8x64xf32>
    %173 = math.tanh %172 : vector<8x64xf32>
    %174 = arith.mulf %169, %173 : vector<8x64xf32>
    %c0_80 = arith.constant 0 : index
    %c0_81 = arith.constant 0 : index
    %175 = vector.load %arg17[%c0_80, %c0_81] : memref<8x64xf32, #tpu.memory_space<vmem>>, vector<8x64xf32>
    tpu.vector_store %arg17[%c0_80, %c0_81], %172 {strides = array<i32>} : memref<8x64xf32, #tpu.memory_space<vmem>>, vector<8x64xf32>,
    %c0_82 = arith.constant 0 : index
    %c64_83 = arith.constant 64 : index
    %176 = vector.load %arg15[%c0_82, %c64_83] : memref<8x128xf32, #tpu.memory_space<vmem>>, vector<8x64xf32>
    tpu.vector_store %arg15[%c0_82, %c64_83], %174 {strides = array<i32>} : memref<8x128xf32, #tpu.memory_space<vmem>>, vector<8x64xf32>,
    %177 = arith.truncf %174 : vector<8x64xf32> to vector<8x64xbf16>
    %178 = arith.index_cast %c2_i32 : i32 to index
    %c0_84 = arith.constant 0 : index
    %c0_85 = arith.constant 0 : index
    %179 = vector.load %arg14[%178, %c0_84, %c0_85] : memref<8x8x64xbf16, #tpu.memory_space<vmem>>, vector<1x8x64xbf16>
    %180 = vector.shape_cast %179 : vector<1x8x64xbf16> to vector<8x64xbf16>
    %181 = vector.shape_cast %177 : vector<8x64xbf16> to vector<1x8x64xbf16>
    tpu.vector_store %arg14[%178, %c0_84, %c0_85], %181 {strides = array<i32>} : memref<8x8x64xbf16, #tpu.memory_space<vmem>>, vector<1x8x64xbf16>,
    %c3_i32 = arith.constant 3 : i32
    %c0_86 = arith.constant 0 : index
    %c0_87 = arith.constant 0 : index
    %182 = vector.load %arg15[%c0_86, %c0_87] : memref<8x128xf32, #tpu.memory_space<vmem>>, vector<8x64xf32>
    %183 = arith.index_cast %c3_i32 : i32 to index
    %c0_88 = arith.constant 0 : index
    %c0_89 = arith.constant 0 : index
    %184 = vector.load %arg13[%183, %c0_88, %c0_89] : memref<8x8x256xbf16, #tpu.memory_space<vmem>>, vector<1x8x256xbf16>
    %185 = vector.shape_cast %184 : vector<1x8x256xbf16> to vector<8x256xbf16>
    %186 = arith.truncf %182 : vector<8x64xf32> to vector<8x64xbf16>
    %cst_90 = arith.constant dense<0.000000e+00> : vector<8x256xf32>
    %187 = tpu.matmul %186, %14, %cst_90 {dimension_numbers = #tpu.dot_dimension_numbers<[1], [0], [0], [1], [0, 0, 1, 1], [], []>} : vector<8x64xbf16>, vector<64x256xbf16>, vector<8x256xf32> -> vector<8x256xf32>
    %188 = arith.extf %185 : vector<8x256xbf16> to vector<8x256xf32>
    %189 = arith.addf %188, %187 : vector<8x256xf32>
    %c0_91 = arith.constant 0 : index
    %c0_92 = arith.constant 0 : index
    %190 = vector.load %arg16[%c0_91, %c0_92] : memref<8x64xf32, #tpu.memory_space<vmem>>, vector<8x64xf32>
    %191 = arith.mulf %189, %29 : vector<8x256xf32>
    %192 = math.tanh %191 : vector<8x256xf32>
    %193 = arith.mulf %192, %29 : vector<8x256xf32>
    %194 = arith.addf %193, %34 : vector<8x256xf32>
    %195 = vector.extract_strided_slice %194 {offsets = [0, 0], sizes = [8, 64], strides = [1, 1]} : vector<8x256xf32> to vector<8x64xf32>
    %196 = vector.extract_strided_slice %194 {offsets = [0, 64], sizes = [8, 64], strides = [1, 1]} : vector<8x256xf32> to vector<8x64xf32>
    %197 = vector.extract_strided_slice %194 {offsets = [0, 128], sizes = [8, 64], strides = [1, 1]} : vector<8x256xf32> to vector<8x64xf32>
    %198 = vector.extract_strided_slice %194 {offsets = [0, 192], sizes = [8, 64], strides = [1, 1]} : vector<8x256xf32> to vector<8x64xf32>
    %199 = arith.mulf %196, %190 : vector<8x64xf32>
    %200 = arith.mulf %195, %197 : vector<8x64xf32>
    %201 = arith.addf %199, %200 : vector<8x64xf32>
    %202 = math.tanh %201 : vector<8x64xf32>
    %203 = arith.mulf %198, %202 : vector<8x64xf32>
    %c0_93 = arith.constant 0 : index
    %c0_94 = arith.constant 0 : index
    %204 = vector.load %arg16[%c0_93, %c0_94] : memref<8x64xf32, #tpu.memory_space<vmem>>, vector<8x64xf32>
    tpu.vector_store %arg16[%c0_93, %c0_94], %201 {strides = array<i32>} : memref<8x64xf32, #tpu.memory_space<vmem>>, vector<8x64xf32>,
    %c0_95 = arith.constant 0 : index
    %c0_96 = arith.constant 0 : index
    %205 = vector.load %arg15[%c0_95, %c0_96] : memref<8x128xf32, #tpu.memory_space<vmem>>, vector<8x64xf32>
    tpu.vector_store %arg15[%c0_95, %c0_96], %203 {strides = array<i32>} : memref<8x128xf32, #tpu.memory_space<vmem>>, vector<8x64xf32>,
    %c0_97 = arith.constant 0 : index
    %c0_98 = arith.constant 0 : index
    %206 = vector.load %arg15[%c0_97, %c0_98] : memref<8x128xf32, #tpu.memory_space<vmem>>, vector<8x128xf32>
    %207 = arith.truncf %206 : vector<8x128xf32> to vector<8x128xbf16>
    %cst_99 = arith.constant dense<0.000000e+00> : vector<8x256xf32>
    %208 = tpu.matmul %207, %15, %cst_99 {dimension_numbers = #tpu.dot_dimension_numbers<[1], [0], [0], [1], [0, 0, 1, 1], [], []>} : vector<8x128xbf16>, vector<128x256xbf16>, vector<8x256xf32> -> vector<8x256xf32>
    %209 = arith.addf %208, %18 : vector<8x256xf32>
    %c0_100 = arith.constant 0 : index
    %c0_101 = arith.constant 0 : index
    %210 = vector.load %arg17[%c0_100, %c0_101] : memref<8x64xf32, #tpu.memory_space<vmem>>, vector<8x64xf32>
    %211 = arith.mulf %209, %29 : vector<8x256xf32>
    %212 = math.tanh %211 : vector<8x256xf32>
    %213 = arith.mulf %212, %29 : vector<8x256xf32>
    %214 = arith.addf %213, %34 : vector<8x256xf32>
    %215 = vector.extract_strided_slice %214 {offsets = [0, 0], sizes = [8, 64], strides = [1, 1]} : vector<8x256xf32> to vector<8x64xf32>
    %216 = vector.extract_strided_slice %214 {offsets = [0, 64], sizes = [8, 64], strides = [1, 1]} : vector<8x256xf32> to vector<8x64xf32>
    %217 = vector.extract_strided_slice %214 {offsets = [0, 128], sizes = [8, 64], strides = [1, 1]} : vector<8x256xf32> to vector<8x64xf32>
    %218 = vector.extract_strided_slice %214 {offsets = [0, 192], sizes = [8, 64], strides = [1, 1]} : vector<8x256xf32> to vector<8x64xf32>
    %219 = arith.mulf %216, %210 : vector<8x64xf32>
    %220 = arith.mulf %215, %217 : vector<8x64xf32>
    %221 = arith.addf %219, %220 : vector<8x64xf32>
    %222 = math.tanh %221 : vector<8x64xf32>
    %223 = arith.mulf %218, %222 : vector<8x64xf32>
    %c0_102 = arith.constant 0 : index
    %c0_103 = arith.constant 0 : index
    %224 = vector.load %arg17[%c0_102, %c0_103] : memref<8x64xf32, #tpu.memory_space<vmem>>, vector<8x64xf32>
    tpu.vector_store %arg17[%c0_102, %c0_103], %221 {strides = array<i32>} : memref<8x64xf32, #tpu.memory_space<vmem>>, vector<8x64xf32>,
    %c0_104 = arith.constant 0 : index
    %c64_105 = arith.constant 64 : index
    %225 = vector.load %arg15[%c0_104, %c64_105] : memref<8x128xf32, #tpu.memory_space<vmem>>, vector<8x64xf32>
    tpu.vector_store %arg15[%c0_104, %c64_105], %223 {strides = array<i32>} : memref<8x128xf32, #tpu.memory_space<vmem>>, vector<8x64xf32>,
    %226 = arith.truncf %223 : vector<8x64xf32> to vector<8x64xbf16>
    %227 = arith.index_cast %c3_i32 : i32 to index
    %c0_106 = arith.constant 0 : index
    %c0_107 = arith.constant 0 : index
    %228 = vector.load %arg14[%227, %c0_106, %c0_107] : memref<8x8x64xbf16, #tpu.memory_space<vmem>>, vector<1x8x64xbf16>
    %229 = vector.shape_cast %228 : vector<1x8x64xbf16> to vector<8x64xbf16>
    %230 = vector.shape_cast %226 : vector<8x64xbf16> to vector<1x8x64xbf16>
    tpu.vector_store %arg14[%227, %c0_106, %c0_107], %230 {strides = array<i32>} : memref<8x8x64xbf16, #tpu.memory_space<vmem>>, vector<1x8x64xbf16>,
    %c4_i32 = arith.constant 4 : i32
    %c0_108 = arith.constant 0 : index
    %c0_109 = arith.constant 0 : index
    %231 = vector.load %arg15[%c0_108, %c0_109] : memref<8x128xf32, #tpu.memory_space<vmem>>, vector<8x64xf32>
    %232 = arith.index_cast %c4_i32 : i32 to index
    %c0_110 = arith.constant 0 : index
    %c0_111 = arith.constant 0 : index
    %233 = vector.load %arg13[%232, %c0_110, %c0_111] : memref<8x8x256xbf16, #tpu.memory_space<vmem>>, vector<1x8x256xbf16>
    %234 = vector.shape_cast %233 : vector<1x8x256xbf16> to vector<8x256xbf16>
    %235 = arith.truncf %231 : vector<8x64xf32> to vector<8x64xbf16>
    %cst_112 = arith.constant dense<0.000000e+00> : vector<8x256xf32>
    %236 = tpu.matmul %235, %14, %cst_112 {dimension_numbers = #tpu.dot_dimension_numbers<[1], [0], [0], [1], [0, 0, 1, 1], [], []>} : vector<8x64xbf16>, vector<64x256xbf16>, vector<8x256xf32> -> vector<8x256xf32>
    %237 = arith.extf %234 : vector<8x256xbf16> to vector<8x256xf32>
    %238 = arith.addf %237, %236 : vector<8x256xf32>
    %c0_113 = arith.constant 0 : index
    %c0_114 = arith.constant 0 : index
    %239 = vector.load %arg16[%c0_113, %c0_114] : memref<8x64xf32, #tpu.memory_space<vmem>>, vector<8x64xf32>
    %240 = arith.mulf %238, %29 : vector<8x256xf32>
    %241 = math.tanh %240 : vector<8x256xf32>
    %242 = arith.mulf %241, %29 : vector<8x256xf32>
    %243 = arith.addf %242, %34 : vector<8x256xf32>
    %244 = vector.extract_strided_slice %243 {offsets = [0, 0], sizes = [8, 64], strides = [1, 1]} : vector<8x256xf32> to vector<8x64xf32>
    %245 = vector.extract_strided_slice %243 {offsets = [0, 64], sizes = [8, 64], strides = [1, 1]} : vector<8x256xf32> to vector<8x64xf32>
    %246 = vector.extract_strided_slice %243 {offsets = [0, 128], sizes = [8, 64], strides = [1, 1]} : vector<8x256xf32> to vector<8x64xf32>
    %247 = vector.extract_strided_slice %243 {offsets = [0, 192], sizes = [8, 64], strides = [1, 1]} : vector<8x256xf32> to vector<8x64xf32>
    %248 = arith.mulf %245, %239 : vector<8x64xf32>
    %249 = arith.mulf %244, %246 : vector<8x64xf32>
    %250 = arith.addf %248, %249 : vector<8x64xf32>
    %251 = math.tanh %250 : vector<8x64xf32>
    %252 = arith.mulf %247, %251 : vector<8x64xf32>
    %c0_115 = arith.constant 0 : index
    %c0_116 = arith.constant 0 : index
    %253 = vector.load %arg16[%c0_115, %c0_116] : memref<8x64xf32, #tpu.memory_space<vmem>>, vector<8x64xf32>
    tpu.vector_store %arg16[%c0_115, %c0_116], %250 {strides = array<i32>} : memref<8x64xf32, #tpu.memory_space<vmem>>, vector<8x64xf32>,
    %c0_117 = arith.constant 0 : index
    %c0_118 = arith.constant 0 : index
    %254 = vector.load %arg15[%c0_117, %c0_118] : memref<8x128xf32, #tpu.memory_space<vmem>>, vector<8x64xf32>
    tpu.vector_store %arg15[%c0_117, %c0_118], %252 {strides = array<i32>} : memref<8x128xf32, #tpu.memory_space<vmem>>, vector<8x64xf32>,
    %c0_119 = arith.constant 0 : index
    %c0_120 = arith.constant 0 : index
    %255 = vector.load %arg15[%c0_119, %c0_120] : memref<8x128xf32, #tpu.memory_space<vmem>>, vector<8x128xf32>
    %256 = arith.truncf %255 : vector<8x128xf32> to vector<8x128xbf16>
    %cst_121 = arith.constant dense<0.000000e+00> : vector<8x256xf32>
    %257 = tpu.matmul %256, %15, %cst_121 {dimension_numbers = #tpu.dot_dimension_numbers<[1], [0], [0], [1], [0, 0, 1, 1], [], []>} : vector<8x128xbf16>, vector<128x256xbf16>, vector<8x256xf32> -> vector<8x256xf32>
    %258 = arith.addf %257, %18 : vector<8x256xf32>
    %c0_122 = arith.constant 0 : index
    %c0_123 = arith.constant 0 : index
    %259 = vector.load %arg17[%c0_122, %c0_123] : memref<8x64xf32, #tpu.memory_space<vmem>>, vector<8x64xf32>
    %260 = arith.mulf %258, %29 : vector<8x256xf32>
    %261 = math.tanh %260 : vector<8x256xf32>
    %262 = arith.mulf %261, %29 : vector<8x256xf32>
    %263 = arith.addf %262, %34 : vector<8x256xf32>
    %264 = vector.extract_strided_slice %263 {offsets = [0, 0], sizes = [8, 64], strides = [1, 1]} : vector<8x256xf32> to vector<8x64xf32>
    %265 = vector.extract_strided_slice %263 {offsets = [0, 64], sizes = [8, 64], strides = [1, 1]} : vector<8x256xf32> to vector<8x64xf32>
    %266 = vector.extract_strided_slice %263 {offsets = [0, 128], sizes = [8, 64], strides = [1, 1]} : vector<8x256xf32> to vector<8x64xf32>
    %267 = vector.extract_strided_slice %263 {offsets = [0, 192], sizes = [8, 64], strides = [1, 1]} : vector<8x256xf32> to vector<8x64xf32>
    %268 = arith.mulf %265, %259 : vector<8x64xf32>
    %269 = arith.mulf %264, %266 : vector<8x64xf32>
    %270 = arith.addf %268, %269 : vector<8x64xf32>
    %271 = math.tanh %270 : vector<8x64xf32>
    %272 = arith.mulf %267, %271 : vector<8x64xf32>
    %c0_124 = arith.constant 0 : index
    %c0_125 = arith.constant 0 : index
    %273 = vector.load %arg17[%c0_124, %c0_125] : memref<8x64xf32, #tpu.memory_space<vmem>>, vector<8x64xf32>
    tpu.vector_store %arg17[%c0_124, %c0_125], %270 {strides = array<i32>} : memref<8x64xf32, #tpu.memory_space<vmem>>, vector<8x64xf32>,
    %c0_126 = arith.constant 0 : index
    %c64_127 = arith.constant 64 : index
    %274 = vector.load %arg15[%c0_126, %c64_127] : memref<8x128xf32, #tpu.memory_space<vmem>>, vector<8x64xf32>
    tpu.vector_store %arg15[%c0_126, %c64_127], %272 {strides = array<i32>} : memref<8x128xf32, #tpu.memory_space<vmem>>, vector<8x64xf32>,
    %275 = arith.truncf %272 : vector<8x64xf32> to vector<8x64xbf16>
    %276 = arith.index_cast %c4_i32 : i32 to index
    %c0_128 = arith.constant 0 : index
    %c0_129 = arith.constant 0 : index
    %277 = vector.load %arg14[%276, %c0_128, %c0_129] : memref<8x8x64xbf16, #tpu.memory_space<vmem>>, vector<1x8x64xbf16>
    %278 = vector.shape_cast %277 : vector<1x8x64xbf16> to vector<8x64xbf16>
    %279 = vector.shape_cast %275 : vector<8x64xbf16> to vector<1x8x64xbf16>
    tpu.vector_store %arg14[%276, %c0_128, %c0_129], %279 {strides = array<i32>} : memref<8x8x64xbf16, #tpu.memory_space<vmem>>, vector<1x8x64xbf16>,
    %c5_i32 = arith.constant 5 : i32
    %c0_130 = arith.constant 0 : index
    %c0_131 = arith.constant 0 : index
    %280 = vector.load %arg15[%c0_130, %c0_131] : memref<8x128xf32, #tpu.memory_space<vmem>>, vector<8x64xf32>
    %281 = arith.index_cast %c5_i32 : i32 to index
    %c0_132 = arith.constant 0 : index
    %c0_133 = arith.constant 0 : index
    %282 = vector.load %arg13[%281, %c0_132, %c0_133] : memref<8x8x256xbf16, #tpu.memory_space<vmem>>, vector<1x8x256xbf16>
    %283 = vector.shape_cast %282 : vector<1x8x256xbf16> to vector<8x256xbf16>
    %284 = arith.truncf %280 : vector<8x64xf32> to vector<8x64xbf16>
    %cst_134 = arith.constant dense<0.000000e+00> : vector<8x256xf32>
    %285 = tpu.matmul %284, %14, %cst_134 {dimension_numbers = #tpu.dot_dimension_numbers<[1], [0], [0], [1], [0, 0, 1, 1], [], []>} : vector<8x64xbf16>, vector<64x256xbf16>, vector<8x256xf32> -> vector<8x256xf32>
    %286 = arith.extf %283 : vector<8x256xbf16> to vector<8x256xf32>
    %287 = arith.addf %286, %285 : vector<8x256xf32>
    %c0_135 = arith.constant 0 : index
    %c0_136 = arith.constant 0 : index
    %288 = vector.load %arg16[%c0_135, %c0_136] : memref<8x64xf32, #tpu.memory_space<vmem>>, vector<8x64xf32>
    %289 = arith.mulf %287, %29 : vector<8x256xf32>
    %290 = math.tanh %289 : vector<8x256xf32>
    %291 = arith.mulf %290, %29 : vector<8x256xf32>
    %292 = arith.addf %291, %34 : vector<8x256xf32>
    %293 = vector.extract_strided_slice %292 {offsets = [0, 0], sizes = [8, 64], strides = [1, 1]} : vector<8x256xf32> to vector<8x64xf32>
    %294 = vector.extract_strided_slice %292 {offsets = [0, 64], sizes = [8, 64], strides = [1, 1]} : vector<8x256xf32> to vector<8x64xf32>
    %295 = vector.extract_strided_slice %292 {offsets = [0, 128], sizes = [8, 64], strides = [1, 1]} : vector<8x256xf32> to vector<8x64xf32>
    %296 = vector.extract_strided_slice %292 {offsets = [0, 192], sizes = [8, 64], strides = [1, 1]} : vector<8x256xf32> to vector<8x64xf32>
    %297 = arith.mulf %294, %288 : vector<8x64xf32>
    %298 = arith.mulf %293, %295 : vector<8x64xf32>
    %299 = arith.addf %297, %298 : vector<8x64xf32>
    %300 = math.tanh %299 : vector<8x64xf32>
    %301 = arith.mulf %296, %300 : vector<8x64xf32>
    %c0_137 = arith.constant 0 : index
    %c0_138 = arith.constant 0 : index
    %302 = vector.load %arg16[%c0_137, %c0_138] : memref<8x64xf32, #tpu.memory_space<vmem>>, vector<8x64xf32>
    tpu.vector_store %arg16[%c0_137, %c0_138], %299 {strides = array<i32>} : memref<8x64xf32, #tpu.memory_space<vmem>>, vector<8x64xf32>,
    %c0_139 = arith.constant 0 : index
    %c0_140 = arith.constant 0 : index
    %303 = vector.load %arg15[%c0_139, %c0_140] : memref<8x128xf32, #tpu.memory_space<vmem>>, vector<8x64xf32>
    tpu.vector_store %arg15[%c0_139, %c0_140], %301 {strides = array<i32>} : memref<8x128xf32, #tpu.memory_space<vmem>>, vector<8x64xf32>,
    %c0_141 = arith.constant 0 : index
    %c0_142 = arith.constant 0 : index
    %304 = vector.load %arg15[%c0_141, %c0_142] : memref<8x128xf32, #tpu.memory_space<vmem>>, vector<8x128xf32>
    %305 = arith.truncf %304 : vector<8x128xf32> to vector<8x128xbf16>
    %cst_143 = arith.constant dense<0.000000e+00> : vector<8x256xf32>
    %306 = tpu.matmul %305, %15, %cst_143 {dimension_numbers = #tpu.dot_dimension_numbers<[1], [0], [0], [1], [0, 0, 1, 1], [], []>} : vector<8x128xbf16>, vector<128x256xbf16>, vector<8x256xf32> -> vector<8x256xf32>
    %307 = arith.addf %306, %18 : vector<8x256xf32>
    %c0_144 = arith.constant 0 : index
    %c0_145 = arith.constant 0 : index
    %308 = vector.load %arg17[%c0_144, %c0_145] : memref<8x64xf32, #tpu.memory_space<vmem>>, vector<8x64xf32>
    %309 = arith.mulf %307, %29 : vector<8x256xf32>
    %310 = math.tanh %309 : vector<8x256xf32>
    %311 = arith.mulf %310, %29 : vector<8x256xf32>
    %312 = arith.addf %311, %34 : vector<8x256xf32>
    %313 = vector.extract_strided_slice %312 {offsets = [0, 0], sizes = [8, 64], strides = [1, 1]} : vector<8x256xf32> to vector<8x64xf32>
    %314 = vector.extract_strided_slice %312 {offsets = [0, 64], sizes = [8, 64], strides = [1, 1]} : vector<8x256xf32> to vector<8x64xf32>
    %315 = vector.extract_strided_slice %312 {offsets = [0, 128], sizes = [8, 64], strides = [1, 1]} : vector<8x256xf32> to vector<8x64xf32>
    %316 = vector.extract_strided_slice %312 {offsets = [0, 192], sizes = [8, 64], strides = [1, 1]} : vector<8x256xf32> to vector<8x64xf32>
    %317 = arith.mulf %314, %308 : vector<8x64xf32>
    %318 = arith.mulf %313, %315 : vector<8x64xf32>
    %319 = arith.addf %317, %318 : vector<8x64xf32>
    %320 = math.tanh %319 : vector<8x64xf32>
    %321 = arith.mulf %316, %320 : vector<8x64xf32>
    %c0_146 = arith.constant 0 : index
    %c0_147 = arith.constant 0 : index
    %322 = vector.load %arg17[%c0_146, %c0_147] : memref<8x64xf32, #tpu.memory_space<vmem>>, vector<8x64xf32>
    tpu.vector_store %arg17[%c0_146, %c0_147], %319 {strides = array<i32>} : memref<8x64xf32, #tpu.memory_space<vmem>>, vector<8x64xf32>,
    %c0_148 = arith.constant 0 : index
    %c64_149 = arith.constant 64 : index
    %323 = vector.load %arg15[%c0_148, %c64_149] : memref<8x128xf32, #tpu.memory_space<vmem>>, vector<8x64xf32>
    tpu.vector_store %arg15[%c0_148, %c64_149], %321 {strides = array<i32>} : memref<8x128xf32, #tpu.memory_space<vmem>>, vector<8x64xf32>,
    %324 = arith.truncf %321 : vector<8x64xf32> to vector<8x64xbf16>
    %325 = arith.index_cast %c5_i32 : i32 to index
    %c0_150 = arith.constant 0 : index
    %c0_151 = arith.constant 0 : index
    %326 = vector.load %arg14[%325, %c0_150, %c0_151] : memref<8x8x64xbf16, #tpu.memory_space<vmem>>, vector<1x8x64xbf16>
    %327 = vector.shape_cast %326 : vector<1x8x64xbf16> to vector<8x64xbf16>
    %328 = vector.shape_cast %324 : vector<8x64xbf16> to vector<1x8x64xbf16>
    tpu.vector_store %arg14[%325, %c0_150, %c0_151], %328 {strides = array<i32>} : memref<8x8x64xbf16, #tpu.memory_space<vmem>>, vector<1x8x64xbf16>,
    %c6_i32 = arith.constant 6 : i32
    %c0_152 = arith.constant 0 : index
    %c0_153 = arith.constant 0 : index
    %329 = vector.load %arg15[%c0_152, %c0_153] : memref<8x128xf32, #tpu.memory_space<vmem>>, vector<8x64xf32>
    %330 = arith.index_cast %c6_i32 : i32 to index
    %c0_154 = arith.constant 0 : index
    %c0_155 = arith.constant 0 : index
    %331 = vector.load %arg13[%330, %c0_154, %c0_155] : memref<8x8x256xbf16, #tpu.memory_space<vmem>>, vector<1x8x256xbf16>
    %332 = vector.shape_cast %331 : vector<1x8x256xbf16> to vector<8x256xbf16>
    %333 = arith.truncf %329 : vector<8x64xf32> to vector<8x64xbf16>
    %cst_156 = arith.constant dense<0.000000e+00> : vector<8x256xf32>
    %334 = tpu.matmul %333, %14, %cst_156 {dimension_numbers = #tpu.dot_dimension_numbers<[1], [0], [0], [1], [0, 0, 1, 1], [], []>} : vector<8x64xbf16>, vector<64x256xbf16>, vector<8x256xf32> -> vector<8x256xf32>
    %335 = arith.extf %332 : vector<8x256xbf16> to vector<8x256xf32>
    %336 = arith.addf %335, %334 : vector<8x256xf32>
    %c0_157 = arith.constant 0 : index
    %c0_158 = arith.constant 0 : index
    %337 = vector.load %arg16[%c0_157, %c0_158] : memref<8x64xf32, #tpu.memory_space<vmem>>, vector<8x64xf32>
    %338 = arith.mulf %336, %29 : vector<8x256xf32>
    %339 = math.tanh %338 : vector<8x256xf32>
    %340 = arith.mulf %339, %29 : vector<8x256xf32>
    %341 = arith.addf %340, %34 : vector<8x256xf32>
    %342 = vector.extract_strided_slice %341 {offsets = [0, 0], sizes = [8, 64], strides = [1, 1]} : vector<8x256xf32> to vector<8x64xf32>
    %343 = vector.extract_strided_slice %341 {offsets = [0, 64], sizes = [8, 64], strides = [1, 1]} : vector<8x256xf32> to vector<8x64xf32>
    %344 = vector.extract_strided_slice %341 {offsets = [0, 128], sizes = [8, 64], strides = [1, 1]} : vector<8x256xf32> to vector<8x64xf32>
    %345 = vector.extract_strided_slice %341 {offsets = [0, 192], sizes = [8, 64], strides = [1, 1]} : vector<8x256xf32> to vector<8x64xf32>
    %346 = arith.mulf %343, %337 : vector<8x64xf32>
    %347 = arith.mulf %342, %344 : vector<8x64xf32>
    %348 = arith.addf %346, %347 : vector<8x64xf32>
    %349 = math.tanh %348 : vector<8x64xf32>
    %350 = arith.mulf %345, %349 : vector<8x64xf32>
    %c0_159 = arith.constant 0 : index
    %c0_160 = arith.constant 0 : index
    %351 = vector.load %arg16[%c0_159, %c0_160] : memref<8x64xf32, #tpu.memory_space<vmem>>, vector<8x64xf32>
    tpu.vector_store %arg16[%c0_159, %c0_160], %348 {strides = array<i32>} : memref<8x64xf32, #tpu.memory_space<vmem>>, vector<8x64xf32>,
    %c0_161 = arith.constant 0 : index
    %c0_162 = arith.constant 0 : index
    %352 = vector.load %arg15[%c0_161, %c0_162] : memref<8x128xf32, #tpu.memory_space<vmem>>, vector<8x64xf32>
    tpu.vector_store %arg15[%c0_161, %c0_162], %350 {strides = array<i32>} : memref<8x128xf32, #tpu.memory_space<vmem>>, vector<8x64xf32>,
    %c0_163 = arith.constant 0 : index
    %c0_164 = arith.constant 0 : index
    %353 = vector.load %arg15[%c0_163, %c0_164] : memref<8x128xf32, #tpu.memory_space<vmem>>, vector<8x128xf32>
    %354 = arith.truncf %353 : vector<8x128xf32> to vector<8x128xbf16>
    %cst_165 = arith.constant dense<0.000000e+00> : vector<8x256xf32>
    %355 = tpu.matmul %354, %15, %cst_165 {dimension_numbers = #tpu.dot_dimension_numbers<[1], [0], [0], [1], [0, 0, 1, 1], [], []>} : vector<8x128xbf16>, vector<128x256xbf16>, vector<8x256xf32> -> vector<8x256xf32>
    %356 = arith.addf %355, %18 : vector<8x256xf32>
    %c0_166 = arith.constant 0 : index
    %c0_167 = arith.constant 0 : index
    %357 = vector.load %arg17[%c0_166, %c0_167] : memref<8x64xf32, #tpu.memory_space<vmem>>, vector<8x64xf32>
    %358 = arith.mulf %356, %29 : vector<8x256xf32>
    %359 = math.tanh %358 : vector<8x256xf32>
    %360 = arith.mulf %359, %29 : vector<8x256xf32>
    %361 = arith.addf %360, %34 : vector<8x256xf32>
    %362 = vector.extract_strided_slice %361 {offsets = [0, 0], sizes = [8, 64], strides = [1, 1]} : vector<8x256xf32> to vector<8x64xf32>
    %363 = vector.extract_strided_slice %361 {offsets = [0, 64], sizes = [8, 64], strides = [1, 1]} : vector<8x256xf32> to vector<8x64xf32>
    %364 = vector.extract_strided_slice %361 {offsets = [0, 128], sizes = [8, 64], strides = [1, 1]} : vector<8x256xf32> to vector<8x64xf32>
    %365 = vector.extract_strided_slice %361 {offsets = [0, 192], sizes = [8, 64], strides = [1, 1]} : vector<8x256xf32> to vector<8x64xf32>
    %366 = arith.mulf %363, %357 : vector<8x64xf32>
    %367 = arith.mulf %362, %364 : vector<8x64xf32>
    %368 = arith.addf %366, %367 : vector<8x64xf32>
    %369 = math.tanh %368 : vector<8x64xf32>
    %370 = arith.mulf %365, %369 : vector<8x64xf32>
    %c0_168 = arith.constant 0 : index
    %c0_169 = arith.constant 0 : index
    %371 = vector.load %arg17[%c0_168, %c0_169] : memref<8x64xf32, #tpu.memory_space<vmem>>, vector<8x64xf32>
    tpu.vector_store %arg17[%c0_168, %c0_169], %368 {strides = array<i32>} : memref<8x64xf32, #tpu.memory_space<vmem>>, vector<8x64xf32>,
    %c0_170 = arith.constant 0 : index
    %c64_171 = arith.constant 64 : index
    %372 = vector.load %arg15[%c0_170, %c64_171] : memref<8x128xf32, #tpu.memory_space<vmem>>, vector<8x64xf32>
    tpu.vector_store %arg15[%c0_170, %c64_171], %370 {strides = array<i32>} : memref<8x128xf32, #tpu.memory_space<vmem>>, vector<8x64xf32>,
    %373 = arith.truncf %370 : vector<8x64xf32> to vector<8x64xbf16>
    %374 = arith.index_cast %c6_i32 : i32 to index
    %c0_172 = arith.constant 0 : index
    %c0_173 = arith.constant 0 : index
    %375 = vector.load %arg14[%374, %c0_172, %c0_173] : memref<8x8x64xbf16, #tpu.memory_space<vmem>>, vector<1x8x64xbf16>
    %376 = vector.shape_cast %375 : vector<1x8x64xbf16> to vector<8x64xbf16>
    %377 = vector.shape_cast %373 : vector<8x64xbf16> to vector<1x8x64xbf16>
    tpu.vector_store %arg14[%374, %c0_172, %c0_173], %377 {strides = array<i32>} : memref<8x8x64xbf16, #tpu.memory_space<vmem>>, vector<1x8x64xbf16>,
    %c7_i32 = arith.constant 7 : i32
    %c0_174 = arith.constant 0 : index
    %c0_175 = arith.constant 0 : index
    %378 = vector.load %arg15[%c0_174, %c0_175] : memref<8x128xf32, #tpu.memory_space<vmem>>, vector<8x64xf32>
    %379 = arith.index_cast %c7_i32 : i32 to index
    %c0_176 = arith.constant 0 : index
    %c0_177 = arith.constant 0 : index
    %380 = vector.load %arg13[%379, %c0_176, %c0_177] : memref<8x8x256xbf16, #tpu.memory_space<vmem>>, vector<1x8x256xbf16>
    %381 = vector.shape_cast %380 : vector<1x8x256xbf16> to vector<8x256xbf16>
    %382 = arith.truncf %378 : vector<8x64xf32> to vector<8x64xbf16>
    %cst_178 = arith.constant dense<0.000000e+00> : vector<8x256xf32>
    %383 = tpu.matmul %382, %14, %cst_178 {dimension_numbers = #tpu.dot_dimension_numbers<[1], [0], [0], [1], [0, 0, 1, 1], [], []>} : vector<8x64xbf16>, vector<64x256xbf16>, vector<8x256xf32> -> vector<8x256xf32>
    %384 = arith.extf %381 : vector<8x256xbf16> to vector<8x256xf32>
    %385 = arith.addf %384, %383 : vector<8x256xf32>
    %c0_179 = arith.constant 0 : index
    %c0_180 = arith.constant 0 : index
    %386 = vector.load %arg16[%c0_179, %c0_180] : memref<8x64xf32, #tpu.memory_space<vmem>>, vector<8x64xf32>
    %387 = arith.mulf %385, %29 : vector<8x256xf32>
    %388 = math.tanh %387 : vector<8x256xf32>
    %389 = arith.mulf %388, %29 : vector<8x256xf32>
    %390 = arith.addf %389, %34 : vector<8x256xf32>
    %391 = vector.extract_strided_slice %390 {offsets = [0, 0], sizes = [8, 64], strides = [1, 1]} : vector<8x256xf32> to vector<8x64xf32>
    %392 = vector.extract_strided_slice %390 {offsets = [0, 64], sizes = [8, 64], strides = [1, 1]} : vector<8x256xf32> to vector<8x64xf32>
    %393 = vector.extract_strided_slice %390 {offsets = [0, 128], sizes = [8, 64], strides = [1, 1]} : vector<8x256xf32> to vector<8x64xf32>
    %394 = vector.extract_strided_slice %390 {offsets = [0, 192], sizes = [8, 64], strides = [1, 1]} : vector<8x256xf32> to vector<8x64xf32>
    %395 = arith.mulf %392, %386 : vector<8x64xf32>
    %396 = arith.mulf %391, %393 : vector<8x64xf32>
    %397 = arith.addf %395, %396 : vector<8x64xf32>
    %398 = math.tanh %397 : vector<8x64xf32>
    %399 = arith.mulf %394, %398 : vector<8x64xf32>
    %c0_181 = arith.constant 0 : index
    %c0_182 = arith.constant 0 : index
    %400 = vector.load %arg16[%c0_181, %c0_182] : memref<8x64xf32, #tpu.memory_space<vmem>>, vector<8x64xf32>
    tpu.vector_store %arg16[%c0_181, %c0_182], %397 {strides = array<i32>} : memref<8x64xf32, #tpu.memory_space<vmem>>, vector<8x64xf32>,
    %c0_183 = arith.constant 0 : index
    %c0_184 = arith.constant 0 : index
    %401 = vector.load %arg15[%c0_183, %c0_184] : memref<8x128xf32, #tpu.memory_space<vmem>>, vector<8x64xf32>
    tpu.vector_store %arg15[%c0_183, %c0_184], %399 {strides = array<i32>} : memref<8x128xf32, #tpu.memory_space<vmem>>, vector<8x64xf32>,
    %c0_185 = arith.constant 0 : index
    %c0_186 = arith.constant 0 : index
    %402 = vector.load %arg15[%c0_185, %c0_186] : memref<8x128xf32, #tpu.memory_space<vmem>>, vector<8x128xf32>
    %403 = arith.truncf %402 : vector<8x128xf32> to vector<8x128xbf16>
    %cst_187 = arith.constant dense<0.000000e+00> : vector<8x256xf32>
    %404 = tpu.matmul %403, %15, %cst_187 {dimension_numbers = #tpu.dot_dimension_numbers<[1], [0], [0], [1], [0, 0, 1, 1], [], []>} : vector<8x128xbf16>, vector<128x256xbf16>, vector<8x256xf32> -> vector<8x256xf32>
    %405 = arith.addf %404, %18 : vector<8x256xf32>
    %c0_188 = arith.constant 0 : index
    %c0_189 = arith.constant 0 : index
    %406 = vector.load %arg17[%c0_188, %c0_189] : memref<8x64xf32, #tpu.memory_space<vmem>>, vector<8x64xf32>
    %407 = arith.mulf %405, %29 : vector<8x256xf32>
    %408 = math.tanh %407 : vector<8x256xf32>
    %409 = arith.mulf %408, %29 : vector<8x256xf32>
    %410 = arith.addf %409, %34 : vector<8x256xf32>
    %411 = vector.extract_strided_slice %410 {offsets = [0, 0], sizes = [8, 64], strides = [1, 1]} : vector<8x256xf32> to vector<8x64xf32>
    %412 = vector.extract_strided_slice %410 {offsets = [0, 64], sizes = [8, 64], strides = [1, 1]} : vector<8x256xf32> to vector<8x64xf32>
    %413 = vector.extract_strided_slice %410 {offsets = [0, 128], sizes = [8, 64], strides = [1, 1]} : vector<8x256xf32> to vector<8x64xf32>
    %414 = vector.extract_strided_slice %410 {offsets = [0, 192], sizes = [8, 64], strides = [1, 1]} : vector<8x256xf32> to vector<8x64xf32>
    %415 = arith.mulf %412, %406 : vector<8x64xf32>
    %416 = arith.mulf %411, %413 : vector<8x64xf32>
    %417 = arith.addf %415, %416 : vector<8x64xf32>
    %418 = math.tanh %417 : vector<8x64xf32>
    %419 = arith.mulf %414, %418 : vector<8x64xf32>
    %c0_190 = arith.constant 0 : index
    %c0_191 = arith.constant 0 : index
    %420 = vector.load %arg17[%c0_190, %c0_191] : memref<8x64xf32, #tpu.memory_space<vmem>>, vector<8x64xf32>
    tpu.vector_store %arg17[%c0_190, %c0_191], %417 {strides = array<i32>} : memref<8x64xf32, #tpu.memory_space<vmem>>, vector<8x64xf32>,
    %c0_192 = arith.constant 0 : index
    %c64_193 = arith.constant 64 : index
    %421 = vector.load %arg15[%c0_192, %c64_193] : memref<8x128xf32, #tpu.memory_space<vmem>>, vector<8x64xf32>
    tpu.vector_store %arg15[%c0_192, %c64_193], %419 {strides = array<i32>} : memref<8x128xf32, #tpu.memory_space<vmem>>, vector<8x64xf32>,
    %422 = arith.truncf %419 : vector<8x64xf32> to vector<8x64xbf16>
    %423 = arith.index_cast %c7_i32 : i32 to index
    %c0_194 = arith.constant 0 : index
    %c0_195 = arith.constant 0 : index
    %424 = vector.load %arg14[%423, %c0_194, %c0_195] : memref<8x8x64xbf16, #tpu.memory_space<vmem>>, vector<1x8x64xbf16>
    %425 = vector.shape_cast %424 : vector<1x8x64xbf16> to vector<8x64xbf16>
    %426 = vector.shape_cast %422 : vector<8x64xbf16> to vector<1x8x64xbf16>
    tpu.vector_store %arg14[%423, %c0_194, %c0_195], %426 {strides = array<i32>} : memref<8x8x64xbf16, #tpu.memory_space<vmem>>, vector<1x8x64xbf16>,
    %c8_i32 = arith.constant 8 : i32
    %c0_196 = arith.constant 0 : index
    %c0_197 = arith.constant 0 : index
    %c0_198 = arith.constant 0 : index
    %427 = vector.load %arg14[%c0_196, %c0_197, %c0_198] : memref<8x8x64xbf16, #tpu.memory_space<vmem>>, vector<8x8x64xbf16>
    %428 = vector.shape_cast %427 : vector<8x8x64xbf16> to vector<64x64xbf16>
    %c0_199 = arith.constant 0 : index
    %c0_200 = arith.constant 0 : index
    %429 = vector.load %arg8[%c0_199, %c0_200] : memref<64x16xbf16, #tpu.memory_space<vmem>>, vector<64x16xbf16>
    %cst_201 = arith.constant dense<0.000000e+00> : vector<64x16xf32>
    %430 = tpu.matmul %428, %429, %cst_201 {dimension_numbers = #tpu.dot_dimension_numbers<[1], [0], [0], [1], [0, 0, 1, 1], [], []>} : vector<64x64xbf16>, vector<64x16xbf16>, vector<64x16xf32> -> vector<64x16xf32>
    %c0_202 = arith.constant 0 : index
    %c0_203 = arith.constant 0 : index
    %431 = vector.load %arg9[%c0_202, %c0_203] : memref<1x16xf32, #tpu.memory_space<vmem>>, vector<1x16xf32>
    %432 = vector.broadcast %431 : vector<1x16xf32> to vector<64x16xf32>
    %433 = arith.addf %430, %432 : vector<64x16xf32>
    %cst_204 = arith.constant 0.000000e+00 : f32
    %434 = vector.broadcast %cst_204 : f32 to vector<64x16xf32>
    %435 = arith.maximumf %433, %434 : vector<64x16xf32>
    %c0_205 = arith.constant 0 : index
    %c0_206 = arith.constant 0 : index
    %436 = vector.load %arg10[%c0_205, %c0_206] : memref<1x16xf32, #tpu.memory_space<vmem>>, vector<1x16xf32>
    %437 = vector.broadcast %436 : vector<1x16xf32> to vector<64x16xf32>
    %438 = arith.mulf %435, %437 : vector<64x16xf32>
    %439 = vector.shape_cast %438 : vector<64x16xf32> to vector<8x8x16xf32>
    %cst_207 = arith.constant dense<0.000000e+00> : vector<8x8xf32>
    %440 = vector.multi_reduction <add>, %439, %cst_207 [2] : vector<8x8x16xf32> to vector<8x8xf32>
    %c0_208 = arith.constant 0 : index
    %c0_209 = arith.constant 0 : index
    %441 = vector.load %arg11[%c0_208, %c0_209] : memref<1x1xf32, #tpu.memory_space<vmem>>, vector<1x1xf32>
    %442 = vector.broadcast %441 : vector<1x1xf32> to vector<8x8xf32>
    %443 = arith.addf %440, %442 : vector<8x8xf32>
    %444 = tpu.transpose %443, [1, 0] : vector<8x8xf32> -> vector<8x8xf32>
    %c0_210 = arith.constant 0 : index
    %c0_211 = arith.constant 0 : index
    %445 = vector.load %arg12[%c0_210, %c0_211] : memref<8x8xf32, #tpu.memory_space<vmem>>, vector<8x8xf32>
    tpu.vector_store %arg12[%c0_210, %c0_211], %444 {strides = array<i32>} : memref<8x8xf32, #tpu.memory_space<vmem>>, vector<8x8xf32>,
    return
  }
  func.func @transform_0(%arg0: i32, %arg1: i32) -> (i32, i32, i32) {
    %c0_i32 = arith.constant 0 : i32
    %c0_i32_0 = arith.constant 0 : i32
    return %arg1, %arg0, %c0_i32 : i32, i32, i32
  }
  func.func @transform_1(%arg0: i32, %arg1: i32) -> (i32, i32) {
    %c0_i32 = arith.constant 0 : i32
    %c0_i32_0 = arith.constant 0 : i32
    %c0_i32_1 = arith.constant 0 : i32
    return %c0_i32, %c0_i32_0 : i32, i32
  }
  func.func @transform_2(%arg0: i32, %arg1: i32) -> (i32, i32) {
    %c0_i32 = arith.constant 0 : i32
    %c0_i32_0 = arith.constant 0 : i32
    %c0_i32_1 = arith.constant 0 : i32
    return %c0_i32, %c0_i32_0 : i32, i32
  }
  func.func @transform_3(%arg0: i32, %arg1: i32) -> (i32, i32) {
    %c0_i32 = arith.constant 0 : i32
    %c0_i32_0 = arith.constant 0 : i32
    %c0_i32_1 = arith.constant 0 : i32
    return %c0_i32, %c0_i32_0 : i32, i32
  }
  func.func @transform_4(%arg0: i32, %arg1: i32) -> (i32, i32) {
    %c0_i32 = arith.constant 0 : i32
    %c0_i32_0 = arith.constant 0 : i32
    %c0_i32_1 = arith.constant 0 : i32
    return %c0_i32, %c0_i32_0 : i32, i32
  }
  func.func @transform_5(%arg0: i32, %arg1: i32) -> (i32, i32) {
    %c0_i32 = arith.constant 0 : i32
    %c0_i32_0 = arith.constant 0 : i32
    %c0_i32_1 = arith.constant 0 : i32
    return %c0_i32, %c0_i32_0 : i32, i32
  }
  func.func @transform_6(%arg0: i32, %arg1: i32) -> (i32, i32) {
    %c0_i32 = arith.constant 0 : i32
    %c0_i32_0 = arith.constant 0 : i32
    %c0_i32_1 = arith.constant 0 : i32
    return %c0_i32, %c0_i32_0 : i32, i32
  }
  func.func @transform_7(%arg0: i32, %arg1: i32) -> (i32, i32) {
    %c0_i32 = arith.constant 0 : i32
    %c0_i32_0 = arith.constant 0 : i32
    %c0_i32_1 = arith.constant 0 : i32
    return %c0_i32, %c0_i32_0 : i32, i32
  }
  func.func @transform_8(%arg0: i32, %arg1: i32) -> (i32, i32) {
    %c0_i32 = arith.constant 0 : i32
    %c0_i32_0 = arith.constant 0 : i32
    %c0_i32_1 = arith.constant 0 : i32
    return %c0_i32, %c0_i32_0 : i32, i32
  }
  func.func @transform_9(%arg0: i32, %arg1: i32) -> (i32, i32) {
    %c0_i32 = arith.constant 0 : i32
    %c0_i32_0 = arith.constant 0 : i32
    %c0_i32_1 = arith.constant 0 : i32
    return %c0_i32, %c0_i32_0 : i32, i32
  }
  func.func @transform_10(%arg0: i32, %arg1: i32) -> (i32, i32) {
    %c0_i32 = arith.constant 0 : i32
    return %arg0, %arg1 : i32, i32
  }
}

</mosaic_0001>

<llo_original>
// kernel: ts_rnn_forward.1
$region0: #{ts_rnn_forward.1}
  #allocation0 [shape = 'u32[]', space=smem, size = 0x4, offset = 0x4, fixed_abs, tag = 'smem constant byte address 0x4 - core index']
  #allocation1 [shape = 'u32[72,128]{1,0:T(1,128)}', space=vmem, size = 0x9000, scoped, tag = 'internal scratch']
  #allocation2 [shape = 'bf16[8,8,256]{2,1,0:T(8,128)(2,1)}', space=vmem, size = 0x8000, scoped, tag = 'scratch operand']
  #allocation3 [shape = 'bf16[8,8,64]{2,1,0:T(8,128)(2,1)}', space=vmem, size = 0x4000, scoped, tag = 'scratch operand']
  #allocation4 [shape = 'f32[8,128]{1,0:T(8,128)}', space=vmem, size = 0x1000, scoped, tag = 'scratch operand']
  #allocation5 [shape = 'f32[8,64]{1,0:T(8,128)}', space=vmem, size = 0x1000, scoped, tag = 'scratch operand']
  #allocation6 [shape = 'f32[8,64]{1,0:T(8,128)}', space=vmem, size = 0x1000, scoped, tag = 'scratch operand']
  #allocation7 [shape = 'f32[1,1]{1,0:T(1,128)S(1)}', space=vmem, size = 0x200, scoped, tag = 'scoped memory for ts_rnn_forward.1']
  %s0 = inlined_call_operand.vmem [shape: f32[8,8,13], index: 0, kind: input, shape index: {}]
  %s1 = inlined_call_operand.vmem [shape: bf16[13,256], index: 1, kind: input, shape index: {}]
  %s2 = inlined_call_operand.vmem [shape: f32[1,256], index: 2, kind: input, shape index: {}]
  %s3 = inlined_call_operand.vmem [shape: bf16[64,256], index: 3, kind: input, shape index: {}]
  %s4 = inlined_call_operand.vmem [shape: bf16[128,256], index: 4, kind: input, shape index: {}]
  %s5 = inlined_call_operand.vmem [shape: f32[1,256], index: 5, kind: input, shape index: {}]
  %s6 = inlined_call_operand.vmem [shape: bf16[64,16], index: 6, kind: input, shape index: {}]
  %s7 = inlined_call_operand.vmem [shape: f32[1,16], index: 7, kind: input, shape index: {}]
  %s8 = inlined_call_operand.vmem [shape: f32[1,16], index: 8, kind: input, shape index: {}]
  %s9 = inlined_call_operand.<no memory space> [shape: f32[1,1], index: 9, kind: input, shape index: {}]
  %s10 = inlined_call_operand.vmem [shape: f32[8,8], index: 10, kind: output, shape index: {}]
  %s11 = sld [smem:[#allocation0]]
  $region54: #{ts_rnn_forward.1} parent=0
    _
  %s13 = ssub.s32 1, %s11
  %s14 = scalar_select 0, %s13, %s11
  %v15 = vstv %s9
  %16 = vst [vmem:[#allocation7] sm:$0x1] %v15
  // Predicated region
  $region2: #{ts_rnn_forward.1} parent=0 // pred_check
    _
  $region3: #{ts_rnn_forward.1} parent=0 // pred_check_branch
    %18 = sbr.rel (0) target = $region5
  $region4: #{ts_rnn_forward.1} parent=0 // pred_region
    _
  $region5: #{ts_rnn_forward.1} parent=0 // pred_fallthru
    _
  // Predicated region
  $region6: #{ts_rnn_forward.1} parent=0 // pred_check
    _
  $region7: #{ts_rnn_forward.1} parent=0 // pred_check_branch
    %20 = sbr.rel (0) target = $region9
  $region8: #{ts_rnn_forward.1} parent=0 // pred_region
    _
  $region9: #{ts_rnn_forward.1} parent=0 // pred_fallthru
    _
  // Predicated region
  $region10: #{ts_rnn_forward.1} parent=0 // pred_check
    _
  $region11: #{ts_rnn_forward.1} parent=0 // pred_check_branch
    %22 = sbr.rel (0) target = $region13
  $region12: #{ts_rnn_forward.1} parent=0 // pred_region
    _
  $region13: #{ts_rnn_forward.1} parent=0 // pred_fallthru
    _
  // Predicated region
  $region14: #{ts_rnn_forward.1} parent=0 // pred_check
    _
  $region15: #{ts_rnn_forward.1} parent=0 // pred_check_branch
    %24 = sbr.rel (0) target = $region17
  $region16: #{ts_rnn_forward.1} parent=0 // pred_region
    _
  $region17: #{ts_rnn_forward.1} parent=0 // pred_fallthru
    _
  // Predicated region
  $region18: #{ts_rnn_forward.1} parent=0 // pred_check
    _
  $region19: #{ts_rnn_forward.1} parent=0 // pred_check_branch
    %26 = sbr.rel (0) target = $region21
  $region20: #{ts_rnn_forward.1} parent=0 // pred_region
    _
  $region21: #{ts_rnn_forward.1} parent=0 // pred_fallthru
    _
  // Predicated region
  $region22: #{ts_rnn_forward.1} parent=0 // pred_check
    _
  $region23: #{ts_rnn_forward.1} parent=0 // pred_check_branch
    %28 = sbr.rel (0) target = $region25
  $region24: #{ts_rnn_forward.1} parent=0 // pred_region
    _
  $region25: #{ts_rnn_forward.1} parent=0 // pred_fallthru
    _
  // Predicated region
  $region26: #{ts_rnn_forward.1} parent=0 // pred_check
    _
  $region27: #{ts_rnn_forward.1} parent=0 // pred_check_branch
    %30 = sbr.rel (0) target = $region29
  $region28: #{ts_rnn_forward.1} parent=0 // pred_region
    _
  $region29: #{ts_rnn_forward.1} parent=0 // pred_fallthru
    _
  // Predicated region
  $region30: #{ts_rnn_forward.1} parent=0 // pred_check
    _
  $region31: #{ts_rnn_forward.1} parent=0 // pred_check_branch
    %32 = sbr.rel (0) target = $region33
  $region32: #{ts_rnn_forward.1} parent=0 // pred_region
    _
  $region33: #{ts_rnn_forward.1} parent=0 // pred_fallthru
    _
  // Predicated region
  $region34: #{ts_rnn_forward.1} parent=0 // pred_check
    _
  $region35: #{ts_rnn_forward.1} parent=0 // pred_check_branch
    %34 = sbr.rel (0) target = $region37
  $region36: #{ts_rnn_forward.1} parent=0 // pred_region
    _
  $region37: #{ts_rnn_forward.1} parent=0 // pred_fallthru
    _
  // Predicated region
  $region38: #{ts_rnn_forward.1} parent=0 // pred_check
    _
  $region39: #{ts_rnn_forward.1} parent=0 // pred_check_branch
    %36 = sbr.rel (0) target = $region41
  $region40: #{ts_rnn_forward.1} parent=0 // pred_region
    _
  $region41: #{ts_rnn_forward.1} parent=0 // pred_fallthru
    _
  %p38 = scmp.eq.s32.totalorder 0, 0
  // Predicated region
  $region42: #{ts_rnn_forward.1} parent=0 // pred_check
    %p39 = pneg %p38
  $region43: #{ts_rnn_forward.1} parent=0 // pred_check_branch
    %41 = sbr.rel (%p39) target = $region45
  $region44: #{ts_rnn_forward.1} parent=0 // pred_region
    %42 = vst [vmem:[#allocation4] sm:$0xff] 0.0
    %vm43 = vcmask 523264
    %44 = vst.msk [vmem:[#allocation5] sm:$0xff] %vm43, 0.0
    %45 = vst.msk [vmem:[#allocation6] sm:$0xff] %vm43, 0.0
  $region45: #{ts_rnn_forward.1} parent=0 // pred_fallthru
    _
  %v46 = vld [vmem:[%s1] sm:$0xff]
  %v47 = vld [vmem:[%s1 + $0x8] sm:$0x77]
  %v48 = vld [vmem:[%s2] sm:$0x3]
  %v49 = vld [vmem:[%s0] sm:$0xff]
  %v50 = vld [vmem:[%s0 + $0x8] sm:$0xff]
  %v51 = vld [vmem:[%s0 + $0x10] sm:$0xff]
  %v52 = vld [vmem:[%s0 + $0x18] sm:$0xff]
  %v53 = vld [vmem:[%s0 + $0x20] sm:$0xff]
  %v54 = vld [vmem:[%s0 + $0x28] sm:$0xff]
  %v55 = vld [vmem:[%s0 + $0x30] sm:$0xff]
  %v56 = vld [vmem:[%s0 + $0x38] sm:$0xff]
  %v57 = vpack.c.bf16 %v50, %v49
  %v58 = vpack.c.bf16 %v52, %v51
  %v59 = vpack.c.bf16 %v54, %v53
  %v60 = vpack.c.bf16 %v56, %v55
  %v62 = vperm.slane %v48, 0
  %v63 = vperm.slane %v48, 1
  %v68 = vunpack.c.l.b16 %v46
  %v69 = vunpack.c.h.b16 %v46
  %v70 = vunpack.c.l.b16 %v47
  %v71 = vunpack.c.h.b16 %v47
  %v72 = vpack.c.b16 %v70, %v68
  %v73 = vpack.c.b16 %v71, %v69
  %vm74 = vcmask 105472
  %v76 = vsel %vm74, %v57, 0
  %v79 = vsel %vm74, %v58, 0
  %v82 = vsel %vm74, %v59, 0
  %v85 = vsel %vm74, %v60, 0
  %vm87 = vcmask 1045504
  %vm88 = vcmask 1046528
  %v89 = vsel %vm87, 4294967295, 65535
  %v90 = vsel %vm88, %v89, 0
  %v92 = vand.u32 %v72, %v90
  %v95 = vand.u32 %v73, %v90
  %97 = vmatpush.bf16.msra.mxu0 0
  %98 = vmatpush.bf16.msra.mxu0 0
  %99 = vmatpush.bf16.msra.mxu0 0
  %100 = vmatpush.bf16.msra.mxu0 0
  %101 = vmatpush.bf16.msra.mxu0 0
  %102 = vmatpush.bf16.msra.mxu0 0
  %103 = vmatpush.bf16.msra.mxu0 0
  %104 = vmatpush.bf16.msra.mxu0 %v92
  %105 = vmatmul.bf16.gmra.mxu0 %v76
  %v106 = vpop.f32.mrf.mxu0
  %v107 = vadd.f32 %v62, %v106
  %v108 = vpop.f32.mrf.mxu0
  %v109 = vadd.f32 %v62, %v108
  %110 = vmatmul.bf16.gmra.mxu0 %v79
  %v111 = vpop.f32.mrf.mxu0
  %v112 = vadd.f32 %v62, %v111
  %v113 = vpop.f32.mrf.mxu0
  %v114 = vadd.f32 %v62, %v113
  %115 = vmatmul.bf16.gmra.mxu0 %v82
  %v116 = vpop.f32.mrf.mxu0
  %v117 = vadd.f32 %v62, %v116
  %v118 = vpop.f32.mrf.mxu0
  %v119 = vadd.f32 %v62, %v118
  %120 = vmatmul.bf16.gmra.mxu0 %v85
  %v121 = vpop.f32.mrf.mxu0
  %v122 = vadd.f32 %v62, %v121
  %v123 = vpop.f32.mrf.mxu0
  %v124 = vadd.f32 %v62, %v123
  %125 = vdwg.mxu0
  %126 = vmatpush.bf16.msra.mxu0 0
  %127 = vmatpush.bf16.msra.mxu0 0
  %128 = vmatpush.bf16.msra.mxu0 0
  %129 = vmatpush.bf16.msra.mxu0 0
  %130 = vmatpush.bf16.msra.mxu0 0
  %131 = vmatpush.bf16.msra.mxu0 0
  %132 = vmatpush.bf16.msra.mxu0 0
  %133 = vmatpush.bf16.msra.mxu0 %v95
  %134 = vmatmul.bf16.gmra.mxu0 %v76
  %v135 = vpop.f32.mrf.mxu0
  %v136 = vadd.f32 %v63, %v135
  %v137 = vpop.f32.mrf.mxu0
  %v138 = vadd.f32 %v63, %v137
  %139 = vmatmul.bf16.gmra.mxu0 %v79
  %v140 = vpop.f32.mrf.mxu0
  %v141 = vadd.f32 %v63, %v140
  %v142 = vpop.f32.mrf.mxu0
  %v143 = vadd.f32 %v63, %v142
  %144 = vmatmul.bf16.gmra.mxu0 %v82
  %v145 = vpop.f32.mrf.mxu0
  %v146 = vadd.f32 %v63, %v145
  %v147 = vpop.f32.mrf.mxu0
  %v148 = vadd.f32 %v63, %v147
  %149 = vmatmul.bf16.gmra.mxu0 %v85
  %v150 = vpop.f32.mrf.mxu0
  %v151 = vadd.f32 %v63, %v150
  %v152 = vpop.f32.mrf.mxu0
  %v153 = vadd.f32 %v63, %v152
  %154 = vdwg.mxu0
  %v155 = vpack.c.bf16 %v136, %v107
  %v156 = vpack.c.bf16 %v138, %v109
  %v157 = vpack.c.bf16 %v141, %v112
  %v158 = vpack.c.bf16 %v143, %v114
  %v159 = vpack.c.bf16 %v146, %v117
  %v160 = vpack.c.bf16 %v148, %v119
  %v161 = vpack.c.bf16 %v151, %v122
  %v162 = vpack.c.bf16 %v153, %v124
  %163 = vst [vmem:[#allocation2] sm:$0xff] %v155
  %164 = vst [vmem:[#allocation2 + $0x8] sm:$0xff] %v156
  %165 = vst [vmem:[#allocation2 + $0x10] sm:$0xff] %v157
  %166 = vst [vmem:[#allocation2 + $0x18] sm:$0xff] %v158
  %167 = vst [vmem:[#allocation2 + $0x20] sm:$0xff] %v159
  %168 = vst [vmem:[#allocation2 + $0x28] sm:$0xff] %v160
  %169 = vst [vmem:[#allocation2 + $0x30] sm:$0xff] %v161
  %170 = vst [vmem:[#allocation2 + $0x38] sm:$0xff] %v162
  %v171 = vld [vmem:[%s3] sm:$0xff]
  %v172 = vld [vmem:[%s3 + $0x8] sm:$0xff]
  %v173 = vld [vmem:[%s3 + $0x10] sm:$0xff]
  %v174 = vld [vmem:[%s3 + $0x18] sm:$0xff]
  %v175 = vld [vmem:[%s3 + $0x20] sm:$0xff]
  %v176 = vld [vmem:[%s3 + $0x28] sm:$0xff]
  %v177 = vld [vmem:[%s3 + $0x30] sm:$0xff]
  %v178 = vld [vmem:[%s3 + $0x38] sm:$0xff]
  %v179 = vld [vmem:[%s4] sm:$0xff]
  %v180 = vld [vmem:[%s4 + $0x8] sm:$0xff]
  %v181 = vld [vmem:[%s4 + $0x10] sm:$0xff]
  %v182 = vld [vmem:[%s4 + $0x18] sm:$0xff]
  %v183 = vld [vmem:[%s4 + $0x20] sm:$0xff]
  %v184 = vld [vmem:[%s4 + $0x28] sm:$0xff]
  %v185 = vld [vmem:[%s4 + $0x30] sm:$0xff]
  %v186 = vld [vmem:[%s4 + $0x38] sm:$0xff]
  %v187 = vld [vmem:[%s4 + $0x40] sm:$0xff]
  %v188 = vld [vmem:[%s4 + $0x48] sm:$0xff]
  %v189 = vld [vmem:[%s4 + $0x50] sm:$0xff]
  %v190 = vld [vmem:[%s4 + $0x58] sm:$0xff]
  %v191 = vld [vmem:[%s4 + $0x60] sm:$0xff]
  %v192 = vld [vmem:[%s4 + $0x68] sm:$0xff]
  %v193 = vld [vmem:[%s4 + $0x70] sm:$0xff]
  %v194 = vld [vmem:[%s4 + $0x78] sm:$0xff]
  %v195 = vld [vmem:[%s5] sm:$0x3]
  %v197 = vperm.slane %v195, 0
  %v198 = vperm.slane %v195, 1
  %v201 = vlaneseq
  %v202 = vand.u32 %v201, 127
  %v203 = vadd.s32 %v202, 128
  %vm204 = vcmp.ge.s32.totalorder %v202, 128
  %vm205 = vcmp.ge.s32.totalorder %v203, 128
  %vm206 = vcmp.lt.s32.totalorder %v202, 192
  %vm207 = vcmp.lt.s32.totalorder %v203, 192
  %vm208 = vmand %vm204, %vm206
  %vm209 = vmand %vm205, %vm207
  %v210 = vsel %vm208, 1.0, 0.5
  %v211 = vsel %vm209, 1.0, 0.5
  %v212 = vsel %vm208, 0.0, 0.5
  %v213 = vsel %vm209, 0.0, 0.5
  %v214 = vld [vmem:[#allocation4] sm:$0xff]
  %v215 = vld [vmem:[#allocation2] sm:$0xff]
  %v216 = vpack.c.bf16 %v214, %v214
  %v225 = vunpack.c.l.b16 %v171
  %v226 = vunpack.c.h.b16 %v171
  %v227 = vunpack.c.l.b16 %v172
  %v228 = vunpack.c.h.b16 %v172
  %v229 = vunpack.c.l.b16 %v173
  %v230 = vunpack.c.h.b16 %v173
  %v231 = vunpack.c.l.b16 %v174
  %v232 = vunpack.c.h.b16 %v174
  %v233 = vunpack.c.l.b16 %v175
  %v234 = vunpack.c.h.b16 %v175
  %v235 = vunpack.c.l.b16 %v176
  %v236 = vunpack.c.h.b16 %v176
  %v237 = vunpack.c.l.b16 %v177
  %v238 = vunpack.c.h.b16 %v177
  %v239 = vunpack.c.l.b16 %v178
  %v240 = vunpack.c.h.b16 %v178
  %v241 = vpack.c.b16 %v227, %v225
  %v242 = vpack.c.b16 %v228, %v226
  %v243 = vpack.c.b16 %v231, %v229
  %v244 = vpack.c.b16 %v232, %v230
  %v245 = vpack.c.b16 %v235, %v233
  %v246 = vpack.c.b16 %v236, %v234
  %v247 = vpack.c.b16 %v239, %v237
  %v248 = vpack.c.b16 %v240, %v238
  %vm257 = vcmask 523264
  %v259 = vsel %vm257, %v216, 0
  %261 = vmatpush.bf16.msra.mxu0 0
  %262 = vmatpush.bf16.msra.mxu0 0
  %263 = vmatpush.bf16.msra.mxu0 0
  %264 = vmatpush.bf16.msra.mxu0 0
  %265 = vmatpush.bf16.msra.mxu0 %v247
  %266 = vmatpush.bf16.msra.mxu0 %v245
  %267 = vmatpush.bf16.msra.mxu0 %v243
  %268 = vmatpush.bf16.msra.mxu0 %v241
  %269 = vmatmul.bf16.gmra.mxu0 %v259
  %v270 = vpop.f32.mrf.mxu0
  %v271 = vadd.f32 0.0, %v270
  %v272 = vpop.f32.mrf.mxu0
  %273 = vdwg.mxu0
  %274 = vmatpush.bf16.msra.mxu0 0
  %275 = vmatpush.bf16.msra.mxu0 0
  %276 = vmatpush.bf16.msra.mxu0 0
  %277 = vmatpush.bf16.msra.mxu0 0
  %278 = vmatpush.bf16.msra.mxu0 %v248
  %279 = vmatpush.bf16.msra.mxu0 %v246
  %280 = vmatpush.bf16.msra.mxu0 %v244
  %281 = vmatpush.bf16.msra.mxu0 %v242
  %282 = vmatmul.bf16.gmra.mxu0 %v259
  %v283 = vpop.f32.mrf.mxu0
  %v284 = vadd.f32 0.0, %v283
  %v285 = vpop.f32.mrf.mxu0
  %286 = vdwg.mxu0
  %v287 = vunpack.c.l.bf16 %v215
  %v288 = vunpack.c.h.bf16 %v215
  %v289 = vadd.f32 %v287, %v271
  %v290 = vadd.f32 %v288, %v284
  %v291 = vld [vmem:[#allocation5] sm:$0xff]
  %v292 = vmul.f32 %v289, %v210
  %v293 = vmul.f32 %v290, %v211
  %v294 = vtanh.pop %v292
  %v295 = vtanh.pop %v293
  %v296 = vmul.f32 %v294, %v210
  %v297 = vmul.f32 %v295, %v211
  %v298 = vadd.f32 %v296, %v212
  %v299 = vadd.f32 %v297, %v213
  %301 = vrot.lane.b32.xlu0 %v291, 64
  %v302 = vpop.permute.xlu0 %301
  %v304 = vmul.f32 %v298, %v302
  %v305 = vmul.f32 %v298, %v299
  %307 = vrot.lane.b32.xlu0 %v305, 64
  %v308 = vpop.permute.xlu0 %307
  %v310 = vadd.f32 %v304, %v308
  %v311 = vtanh.pop %v310
  %v312 = vmul.f32 %v299, %v311
  %314 = vrot.lane.b32.xlu0 %v310, 64
  %v315 = vpop.permute.xlu0 %314
  %317 = vst.msk [vmem:[#allocation5] sm:$0xff] %vm257, %v315
  %319 = vrot.lane.b32.xlu0 %v312, 64
  %v320 = vpop.permute.xlu0 %319
  %322 = vst.msk [vmem:[#allocation4] sm:$0xff] %vm257, %v320
  %v323 = vld [vmem:[#allocation4] sm:$0xff]
  %v324 = vpack.c.bf16 %v323, %v323
  %v341 = vunpack.c.l.b16 %v179
  %v342 = vunpack.c.h.b16 %v179
  %v343 = vunpack.c.l.b16 %v180
  %v344 = vunpack.c.h.b16 %v180
  %v345 = vunpack.c.l.b16 %v181
  %v346 = vunpack.c.h.b16 %v181
  %v347 = vunpack.c.l.b16 %v182
  %v348 = vunpack.c.h.b16 %v182
  %v349 = vunpack.c.l.b16 %v183
  %v350 = vunpack.c.h.b16 %v183
  %v351 = vunpack.c.l.b16 %v184
  %v352 = vunpack.c.h.b16 %v184
  %v353 = vunpack.c.l.b16 %v185
  %v354 = vunpack.c.h.b16 %v185
  %v355 = vunpack.c.l.b16 %v186
  %v356 = vunpack.c.h.b16 %v186
  %v357 = vunpack.c.l.b16 %v187
  %v358 = vunpack.c.h.b16 %v187
  %v359 = vunpack.c.l.b16 %v188
  %v360 = vunpack.c.h.b16 %v188
  %v361 = vunpack.c.l.b16 %v189
  %v362 = vunpack.c.h.b16 %v189
  %v363 = vunpack.c.l.b16 %v190
  %v364 = vunpack.c.h.b16 %v190
  %v365 = vunpack.c.l.b16 %v191
  %v366 = vunpack.c.h.b16 %v191
  %v367 = vunpack.c.l.b16 %v192
  %v368 = vunpack.c.h.b16 %v192
  %v369 = vunpack.c.l.b16 %v193
  %v370 = vunpack.c.h.b16 %v193
  %v371 = vunpack.c.l.b16 %v194
  %v372 = vunpack.c.h.b16 %v194
  %v373 = vpack.c.b16 %v343, %v341
  %v374 = vpack.c.b16 %v344, %v342
  %v375 = vpack.c.b16 %v347, %v345
  %v376 = vpack.c.b16 %v348, %v346
  %v377 = vpack.c.b16 %v351, %v349
  %v378 = vpack.c.b16 %v352, %v350
  %v379 = vpack.c.b16 %v355, %v353
  %v380 = vpack.c.b16 %v356, %v354
  %v381 = vpack.c.b16 %v359, %v357
  %v382 = vpack.c.b16 %v360, %v358
  %v383 = vpack.c.b16 %v363, %v361
  %v384 = vpack.c.b16 %v364, %v362
  %v385 = vpack.c.b16 %v367, %v365
  %v386 = vpack.c.b16 %v368, %v366
  %v387 = vpack.c.b16 %v371, %v369
  %v388 = vpack.c.b16 %v372, %v370
  %405 = vmatpush.bf16.msra.mxu0 %v387
  %406 = vmatpush.bf16.msra.mxu0 %v385
  %407 = vmatpush.bf16.msra.mxu0 %v383
  %408 = vmatpush.bf16.msra.mxu0 %v381
  %409 = vmatpush.bf16.msra.mxu0 %v379
  %410 = vmatpush.bf16.msra.mxu0 %v377
  %411 = vmatpush.bf16.msra.mxu0 %v375
  %412 = vmatpush.bf16.msra.mxu0 %v373
  %413 = vmatmul.bf16.gmra.mxu0 %v324
  %v414 = vpop.f32.mrf.mxu0
  %v415 = vadd.f32 %v197, %v414
  %v416 = vpop.f32.mrf.mxu0
  %417 = vdwg.mxu0
  %418 = vmatpush.bf16.msra.mxu0 %v388
  %419 = vmatpush.bf16.msra.mxu0 %v386
  %420 = vmatpush.bf16.msra.mxu0 %v384
  %421 = vmatpush.bf16.msra.mxu0 %v382
  %422 = vmatpush.bf16.msra.mxu0 %v380
  %423 = vmatpush.bf16.msra.mxu0 %v378
  %424 = vmatpush.bf16.msra.mxu0 %v376
  %425 = vmatpush.bf16.msra.mxu0 %v374
  %426 = vmatmul.bf16.gmra.mxu0 %v324
  %v427 = vpop.f32.mrf.mxu0
  %v428 = vadd.f32 %v198, %v427
  %v429 = vpop.f32.mrf.mxu0
  %430 = vdwg.mxu0
  %v431 = vld [vmem:[#allocation6] sm:$0xff]
  %v432 = vmul.f32 %v415, %v210
  %v433 = vmul.f32 %v428, %v211
  %v434 = vtanh.pop %v432
  %v435 = vtanh.pop %v433
  %v436 = vmul.f32 %v434, %v210
  %v437 = vmul.f32 %v435, %v211
  %v438 = vadd.f32 %v436, %v212
  %v439 = vadd.f32 %v437, %v213
  %441 = vrot.lane.b32.xlu0 %v431, 64
  %v442 = vpop.permute.xlu0 %441
  %v444 = vmul.f32 %v438, %v442
  %v445 = vmul.f32 %v438, %v439
  %447 = vrot.lane.b32.xlu0 %v445, 64
  %v448 = vpop.permute.xlu0 %447
  %v450 = vadd.f32 %v444, %v448
  %v451 = vtanh.pop %v450
  %v452 = vmul.f32 %v439, %v451
  %454 = vrot.lane.b32.xlu0 %v450, 64
  %v455 = vpop.permute.xlu0 %454
  %457 = vst.msk [vmem:[#allocation6] sm:$0xff] %vm257, %v455
  %vm458 = vcmask 1048064
  %459 = vst.msk [vmem:[#allocation4] sm:$0xff] %vm458, %v452
  %v460 = vpack.c.bf16 %v452, %v452
  %462 = vrot.lane.b32.xlu0 %v460, 64
  %v463 = vpop.permute.xlu0 %462
  %vm465 = vcmask 519168
  %466 = vst.msk [vmem:[#allocation3] sm:$0xf] %vm465, %v463
  %v467 = vld [vmem:[#allocation4] sm:$0xff]
  %s468 = scalar_lea.vmem [#allocation2], 8
  %v469 = vld [vmem:[%s468] sm:$0xff]
  %v470 = vpack.c.bf16 %v467, %v467
  %v472 = vsel %vm257, %v470, 0
  %474 = vmatpush.bf16.msra.mxu0 0
  %475 = vmatpush.bf16.msra.mxu0 0
  %476 = vmatpush.bf16.msra.mxu0 0
  %477 = vmatpush.bf16.msra.mxu0 0
  %478 = vmatpush.bf16.msra.mxu0 %v247
  %479 = vmatpush.bf16.msra.mxu0 %v245
  %480 = vmatpush.bf16.msra.mxu0 %v243
  %481 = vmatpush.bf16.msra.mxu0 %v241
  %482 = vmatmul.bf16.gmra.mxu0 %v472
  %v483 = vpop.f32.mrf.mxu0
  %v484 = vadd.f32 0.0, %v483
  %v485 = vpop.f32.mrf.mxu0
  %486 = vdwg.mxu0
  %487 = vmatpush.bf16.msra.mxu0 0
  %488 = vmatpush.bf16.msra.mxu0 0
  %489 = vmatpush.bf16.msra.mxu0 0
  %490 = vmatpush.bf16.msra.mxu0 0
  %491 = vmatpush.bf16.msra.mxu0 %v248
  %492 = vmatpush.bf16.msra.mxu0 %v246
  %493 = vmatpush.bf16.msra.mxu0 %v244
  %494 = vmatpush.bf16.msra.mxu0 %v242
  %495 = vmatmul.bf16.gmra.mxu0 %v472
  %v496 = vpop.f32.mrf.mxu0
  %v497 = vadd.f32 0.0, %v496
  %v498 = vpop.f32.mrf.mxu0
  %499 = vdwg.mxu0
  %v500 = vunpack.c.l.bf16 %v469
  %v501 = vunpack.c.h.bf16 %v469
  %v502 = vadd.f32 %v500, %v484
  %v503 = vadd.f32 %v501, %v497
  %v504 = vld [vmem:[#allocation5] sm:$0xff]
  %v505 = vmul.f32 %v502, %v210
  %v506 = vmul.f32 %v503, %v211
  %v507 = vtanh.pop %v505
  %v508 = vtanh.pop %v506
  %v509 = vmul.f32 %v507, %v210
  %v510 = vmul.f32 %v508, %v211
  %v511 = vadd.f32 %v509, %v212
  %v512 = vadd.f32 %v510, %v213
  %514 = vrot.lane.b32.xlu0 %v504, 64
  %v515 = vpop.permute.xlu0 %514
  %v517 = vmul.f32 %v511, %v515
  %v518 = vmul.f32 %v511, %v512
  %520 = vrot.lane.b32.xlu0 %v518, 64
  %v521 = vpop.permute.xlu0 %520
  %v523 = vadd.f32 %v517, %v521
  %v524 = vtanh.pop %v523
  %v525 = vmul.f32 %v512, %v524
  %527 = vrot.lane.b32.xlu0 %v523, 64
  %v528 = vpop.permute.xlu0 %527
  %530 = vst.msk [vmem:[#allocation5] sm:$0xff] %vm257, %v528
  %532 = vrot.lane.b32.xlu0 %v525, 64
  %v533 = vpop.permute.xlu0 %532
  %535 = vst.msk [vmem:[#allocation4] sm:$0xff] %vm257, %v533
  %v536 = vld [vmem:[#allocation4] sm:$0xff]
  %v537 = vpack.c.bf16 %v536, %v536
  %538 = vmatpush.bf16.msra.mxu0 %v387
  %539 = vmatpush.bf16.msra.mxu0 %v385
  %540 = vmatpush.bf16.msra.mxu0 %v383
  %541 = vmatpush.bf16.msra.mxu0 %v381
  %542 = vmatpush.bf16.msra.mxu0 %v379
  %543 = vmatpush.bf16.msra.mxu0 %v377
  %544 = vmatpush.bf16.msra.mxu0 %v375
  %545 = vmatpush.bf16.msra.mxu0 %v373
  %546 = vmatmul.bf16.gmra.mxu0 %v537
  %v547 = vpop.f32.mrf.mxu0
  %v548 = vadd.f32 %v197, %v547
  %v549 = vpop.f32.mrf.mxu0
  %550 = vdwg.mxu0
  %551 = vmatpush.bf16.msra.mxu0 %v388
  %552 = vmatpush.bf16.msra.mxu0 %v386
  %553 = vmatpush.bf16.msra.mxu0 %v384
  %554 = vmatpush.bf16.msra.mxu0 %v382
  %555 = vmatpush.bf16.msra.mxu0 %v380
  %556 = vmatpush.bf16.msra.mxu0 %v378
  %557 = vmatpush.bf16.msra.mxu0 %v376
  %558 = vmatpush.bf16.msra.mxu0 %v374
  %559 = vmatmul.bf16.gmra.mxu0 %v537
  %v560 = vpop.f32.mrf.mxu0
  %v561 = vadd.f32 %v198, %v560
  %v562 = vpop.f32.mrf.mxu0
  %563 = vdwg.mxu0
  %v564 = vld [vmem:[#allocation6] sm:$0xff]
  %v565 = vmul.f32 %v548, %v210
  %v566 = vmul.f32 %v561, %v211
  %v567 = vtanh.pop %v565
  %v568 = vtanh.pop %v566
  %v569 = vmul.f32 %v567, %v210
  %v570 = vmul.f32 %v568, %v211
  %v571 = vadd.f32 %v569, %v212
  %v572 = vadd.f32 %v570, %v213
  %574 = vrot.lane.b32.xlu0 %v564, 64
  %v575 = vpop.permute.xlu0 %574
  %v577 = vmul.f32 %v571, %v575
  %v578 = vmul.f32 %v571, %v572
  %580 = vrot.lane.b32.xlu0 %v578, 64
  %v581 = vpop.permute.xlu0 %580
  %v583 = vadd.f32 %v577, %v581
  %v584 = vtanh.pop %v583
  %v585 = vmul.f32 %v572, %v584
  %587 = vrot.lane.b32.xlu0 %v583, 64
  %v588 = vpop.permute.xlu0 %587
  %590 = vst.msk [vmem:[#allocation6] sm:$0xff] %vm257, %v588
  %591 = vst.msk [vmem:[#allocation4] sm:$0xff] %vm458, %v585
  %v592 = vpack.c.bf16 %v585, %v585
  %594 = vrot.lane.b32.xlu0 %v592, 64
  %v595 = vpop.permute.xlu0 %594
  %s597 = scalar_lea.vmem [#allocation3], 4
  %598 = vst.msk [vmem:[%s597] sm:$0xf] %vm465, %v595
  %v599 = vld [vmem:[#allocation4] sm:$0xff]
  %s600 = scalar_lea.vmem [#allocation2], 16
  %v601 = vld [vmem:[%s600] sm:$0xff]
  %v602 = vpack.c.bf16 %v599, %v599
  %v604 = vsel %vm257, %v602, 0
  %606 = vmatpush.bf16.msra.mxu0 0
  %607 = vmatpush.bf16.msra.mxu0 0
  %608 = vmatpush.bf16.msra.mxu0 0
  %609 = vmatpush.bf16.msra.mxu0 0
  %610 = vmatpush.bf16.msra.mxu0 %v247
  %611 = vmatpush.bf16.msra.mxu0 %v245
  %612 = vmatpush.bf16.msra.mxu0 %v243
  %613 = vmatpush.bf16.msra.mxu0 %v241
  %614 = vmatmul.bf16.gmra.mxu0 %v604
  %v615 = vpop.f32.mrf.mxu0
  %v616 = vadd.f32 0.0, %v615
  %v617 = vpop.f32.mrf.mxu0
  %618 = vdwg.mxu0
  %619 = vmatpush.bf16.msra.mxu0 0
  %620 = vmatpush.bf16.msra.mxu0 0
  %621 = vmatpush.bf16.msra.mxu0 0
  %622 = vmatpush.bf16.msra.mxu0 0
  %623 = vmatpush.bf16.msra.mxu0 %v248
  %624 = vmatpush.bf16.msra.mxu0 %v246
  %625 = vmatpush.bf16.msra.mxu0 %v244
  %626 = vmatpush.bf16.msra.mxu0 %v242
  %627 = vmatmul.bf16.gmra.mxu0 %v604
  %v628 = vpop.f32.mrf.mxu0
  %v629 = vadd.f32 0.0, %v628
  %v630 = vpop.f32.mrf.mxu0
  %631 = vdwg.mxu0
  %v632 = vunpack.c.l.bf16 %v601
  %v633 = vunpack.c.h.bf16 %v601
  %v634 = vadd.f32 %v632, %v616
  %v635 = vadd.f32 %v633, %v629
  %v636 = vld [vmem:[#allocation5] sm:$0xff]
  %v637 = vmul.f32 %v634, %v210
  %v638 = vmul.f32 %v635, %v211
  %v639 = vtanh.pop %v637
  %v640 = vtanh.pop %v638
  %v641 = vmul.f32 %v639, %v210
  %v642 = vmul.f32 %v640, %v211
  %v643 = vadd.f32 %v641, %v212
  %v644 = vadd.f32 %v642, %v213
  %646 = vrot.lane.b32.xlu0 %v636, 64
  %v647 = vpop.permute.xlu0 %646
  %v649 = vmul.f32 %v643, %v647
  %v650 = vmul.f32 %v643, %v644
  %652 = vrot.lane.b32.xlu0 %v650, 64
  %v653 = vpop.permute.xlu0 %652
  %v655 = vadd.f32 %v649, %v653
  %v656 = vtanh.pop %v655
  %v657 = vmul.f32 %v644, %v656
  %659 = vrot.lane.b32.xlu0 %v655, 64
  %v660 = vpop.permute.xlu0 %659
  %662 = vst.msk [vmem:[#allocation5] sm:$0xff] %vm257, %v660
  %664 = vrot.lane.b32.xlu0 %v657, 64
  %v665 = vpop.permute.xlu0 %664
  %667 = vst.msk [vmem:[#allocation4] sm:$0xff] %vm257, %v665
  %v668 = vld [vmem:[#allocation4] sm:$0xff]
  %v669 = vpack.c.bf16 %v668, %v668
  %670 = vmatpush.bf16.msra.mxu0 %v387
  %671 = vmatpush.bf16.msra.mxu0 %v385
  %672 = vmatpush.bf16.msra.mxu0 %v383
  %673 = vmatpush.bf16.msra.mxu0 %v381
  %674 = vmatpush.bf16.msra.mxu0 %v379
  %675 = vmatpush.bf16.msra.mxu0 %v377
  %676 = vmatpush.bf16.msra.mxu0 %v375
  %677 = vmatpush.bf16.msra.mxu0 %v373
  %678 = vmatmul.bf16.gmra.mxu0 %v669
  %v679 = vpop.f32.mrf.mxu0
  %v680 = vadd.f32 %v197, %v679
  %v681 = vpop.f32.mrf.mxu0
  %682 = vdwg.mxu0
  %683 = vmatpush.bf16.msra.mxu0 %v388
  %684 = vmatpush.bf16.msra.mxu0 %v386
  %685 = vmatpush.bf16.msra.mxu0 %v384
  %686 = vmatpush.bf16.msra.mxu0 %v382
  %687 = vmatpush.bf16.msra.mxu0 %v380
  %688 = vmatpush.bf16.msra.mxu0 %v378
  %689 = vmatpush.bf16.msra.mxu0 %v376
  %690 = vmatpush.bf16.msra.mxu0 %v374
  %691 = vmatmul.bf16.gmra.mxu0 %v669
  %v692 = vpop.f32.mrf.mxu0
  %v693 = vadd.f32 %v198, %v692
  %v694 = vpop.f32.mrf.mxu0
  %695 = vdwg.mxu0
  %v696 = vld [vmem:[#allocation6] sm:$0xff]
  %v697 = vmul.f32 %v680, %v210
  %v698 = vmul.f32 %v693, %v211
  %v699 = vtanh.pop %v697
  %v700 = vtanh.pop %v698
  %v701 = vmul.f32 %v699, %v210
  %v702 = vmul.f32 %v700, %v211
  %v703 = vadd.f32 %v701, %v212
  %v704 = vadd.f32 %v702, %v213
  %706 = vrot.lane.b32.xlu0 %v696, 64
  %v707 = vpop.permute.xlu0 %706
  %v709 = vmul.f32 %v703, %v707
  %v710 = vmul.f32 %v703, %v704
  %712 = vrot.lane.b32.xlu0 %v710, 64
  %v713 = vpop.permute.xlu0 %712
  %v715 = vadd.f32 %v709, %v713
  %v716 = vtanh.pop %v715
  %v717 = vmul.f32 %v704, %v716
  %719 = vrot.lane.b32.xlu0 %v715, 64
  %v720 = vpop.permute.xlu0 %719
  %722 = vst.msk [vmem:[#allocation6] sm:$0xff] %vm257, %v720
  %723 = vst.msk [vmem:[#allocation4] sm:$0xff] %vm458, %v717
  %v724 = vpack.c.bf16 %v717, %v717
  %726 = vrot.lane.b32.xlu0 %v724, 64
  %v727 = vpop.permute.xlu0 %726
  %s729 = scalar_lea.vmem [#allocation3], 8
  %730 = vst.msk [vmem:[%s729] sm:$0xf] %vm465, %v727
  %v731 = vld [vmem:[#allocation4] sm:$0xff]
  %s732 = scalar_lea.vmem [#allocation2], 24
  %v733 = vld [vmem:[%s732] sm:$0xff]
  %v734 = vpack.c.bf16 %v731, %v731
  %v736 = vsel %vm257, %v734, 0
  %738 = vmatpush.bf16.msra.mxu0 0
  %739 = vmatpush.bf16.msra.mxu0 0
  %740 = vmatpush.bf16.msra.mxu0 0
  %741 = vmatpush.bf16.msra.mxu0 0
  %742 = vmatpush.bf16.msra.mxu0 %v247
  %743 = vmatpush.bf16.msra.mxu0 %v245
  %744 = vmatpush.bf16.msra.mxu0 %v243
  %745 = vmatpush.bf16.msra.mxu0 %v241
  %746 = vmatmul.bf16.gmra.mxu0 %v736
  %v747 = vpop.f32.mrf.mxu0
  %v748 = vadd.f32 0.0, %v747
  %v749 = vpop.f32.mrf.mxu0
  %750 = vdwg.mxu0
  %751 = vmatpush.bf16.msra.mxu0 0
  %752 = vmatpush.bf16.msra.mxu0 0
  %753 = vmatpush.bf16.msra.mxu0 0
  %754 = vmatpush.bf16.msra.mxu0 0
  %755 = vmatpush.bf16.msra.mxu0 %v248
  %756 = vmatpush.bf16.msra.mxu0 %v246
  %757 = vmatpush.bf16.msra.mxu0 %v244
  %758 = vmatpush.bf16.msra.mxu0 %v242
  %759 = vmatmul.bf16.gmra.mxu0 %v736
  %v760 = vpop.f32.mrf.mxu0
  %v761 = vadd.f32 0.0, %v760
  %v762 = vpop.f32.mrf.mxu0
  %763 = vdwg.mxu0
  %v764 = vunpack.c.l.bf16 %v733
  %v765 = vunpack.c.h.bf16 %v733
  %v766 = vadd.f32 %v764, %v748
  %v767 = vadd.f32 %v765, %v761
  %v768 = vld [vmem:[#allocation5] sm:$0xff]
  %v769 = vmul.f32 %v766, %v210
  %v770 = vmul.f32 %v767, %v211
  %v771 = vtanh.pop %v769
  %v772 = vtanh.pop %v770
  %v773 = vmul.f32 %v771, %v210
  %v774 = vmul.f32 %v772, %v211
  %v775 = vadd.f32 %v773, %v212
  %v776 = vadd.f32 %v774, %v213
  %778 = vrot.lane.b32.xlu0 %v768, 64
  %v779 = vpop.permute.xlu0 %778
  %v781 = vmul.f32 %v775, %v779
  %v782 = vmul.f32 %v775, %v776
  %784 = vrot.lane.b32.xlu0 %v782, 64
  %v785 = vpop.permute.xlu0 %784
  %v787 = vadd.f32 %v781, %v785
  %v788 = vtanh.pop %v787
  %v789 = vmul.f32 %v776, %v788
  %791 = vrot.lane.b32.xlu0 %v787, 64
  %v792 = vpop.permute.xlu0 %791
  %794 = vst.msk [vmem:[#allocation5] sm:$0xff] %vm257, %v792
  %796 = vrot.lane.b32.xlu0 %v789, 64
  %v797 = vpop.permute.xlu0 %796
  %799 = vst.msk [vmem:[#allocation4] sm:$0xff] %vm257, %v797
  %v800 = vld [vmem:[#allocation4] sm:$0xff]
  %v801 = vpack.c.bf16 %v800, %v800
  %802 = vmatpush.bf16.msra.mxu0 %v387
  %803 = vmatpush.bf16.msra.mxu0 %v385
  %804 = vmatpush.bf16.msra.mxu0 %v383
  %805 = vmatpush.bf16.msra.mxu0 %v381
  %806 = vmatpush.bf16.msra.mxu0 %v379
  %807 = vmatpush.bf16.msra.mxu0 %v377
  %808 = vmatpush.bf16.msra.mxu0 %v375
  %809 = vmatpush.bf16.msra.mxu0 %v373
  %810 = vmatmul.bf16.gmra.mxu0 %v801
  %v811 = vpop.f32.mrf.mxu0
  %v812 = vadd.f32 %v197, %v811
  %v813 = vpop.f32.mrf.mxu0
  %814 = vdwg.mxu0
  %815 = vmatpush.bf16.msra.mxu0 %v388
  %816 = vmatpush.bf16.msra.mxu0 %v386
  %817 = vmatpush.bf16.msra.mxu0 %v384
  %818 = vmatpush.bf16.msra.mxu0 %v382
  %819 = vmatpush.bf16.msra.mxu0 %v380
  %820 = vmatpush.bf16.msra.mxu0 %v378
  %821 = vmatpush.bf16.msra.mxu0 %v376
  %822 = vmatpush.bf16.msra.mxu0 %v374
  %823 = vmatmul.bf16.gmra.mxu0 %v801
  %v824 = vpop.f32.mrf.mxu0
  %v825 = vadd.f32 %v198, %v824
  %v826 = vpop.f32.mrf.mxu0
  %827 = vdwg.mxu0
  %v828 = vld [vmem:[#allocation6] sm:$0xff]
  %v829 = vmul.f32 %v812, %v210
  %v830 = vmul.f32 %v825, %v211
  %v831 = vtanh.pop %v829
  %v832 = vtanh.pop %v830
  %v833 = vmul.f32 %v831, %v210
  %v834 = vmul.f32 %v832, %v211
  %v835 = vadd.f32 %v833, %v212
  %v836 = vadd.f32 %v834, %v213
  %838 = vrot.lane.b32.xlu0 %v828, 64
  %v839 = vpop.permute.xlu0 %838
  %v841 = vmul.f32 %v835, %v839
  %v842 = vmul.f32 %v835, %v836
  %844 = vrot.lane.b32.xlu0 %v842, 64
  %v845 = vpop.permute.xlu0 %844
  %v847 = vadd.f32 %v841, %v845
  %v848 = vtanh.pop %v847
  %v849 = vmul.f32 %v836, %v848
  %851 = vrot.lane.b32.xlu0 %v847, 64
  %v852 = vpop.permute.xlu0 %851
  %854 = vst.msk [vmem:[#allocation6] sm:$0xff] %vm257, %v852
  %855 = vst.msk [vmem:[#allocation4] sm:$0xff] %vm458, %v849
  %v856 = vpack.c.bf16 %v849, %v849
  %858 = vrot.lane.b32.xlu0 %v856, 64
  %v859 = vpop.permute.xlu0 %858
  %s861 = scalar_lea.vmem [#allocation3], 12
  %862 = vst.msk [vmem:[%s861] sm:$0xf] %vm465, %v859
  %v863 = vld [vmem:[#allocation4] sm:$0xff]
  %s864 = scalar_lea.vmem [#allocation2], 32
  %v865 = vld [vmem:[%s864] sm:$0xff]
  %v866 = vpack.c.bf16 %v863, %v863
  %v868 = vsel %vm257, %v866, 0
  %870 = vmatpush.bf16.msra.mxu0 0
  %871 = vmatpush.bf16.msra.mxu0 0
  %872 = vmatpush.bf16.msra.mxu0 0
  %873 = vmatpush.bf16.msra.mxu0 0
  %874 = vmatpush.bf16.msra.mxu0 %v247
  %875 = vmatpush.bf16.msra.mxu0 %v245
  %876 = vmatpush.bf16.msra.mxu0 %v243
  %877 = vmatpush.bf16.msra.mxu0 %v241
  %878 = vmatmul.bf16.gmra.mxu0 %v868
  %v879 = vpop.f32.mrf.mxu0
  %v880 = vadd.f32 0.0, %v879
  %v881 = vpop.f32.mrf.mxu0
  %882 = vdwg.mxu0
  %883 = vmatpush.bf16.msra.mxu0 0
  %884 = vmatpush.bf16.msra.mxu0 0
  %885 = vmatpush.bf16.msra.mxu0 0
  %886 = vmatpush.bf16.msra.mxu0 0
  %887 = vmatpush.bf16.msra.mxu0 %v248
  %888 = vmatpush.bf16.msra.mxu0 %v246
  %889 = vmatpush.bf16.msra.mxu0 %v244
  %890 = vmatpush.bf16.msra.mxu0 %v242
  %891 = vmatmul.bf16.gmra.mxu0 %v868
  %v892 = vpop.f32.mrf.mxu0
  %v893 = vadd.f32 0.0, %v892
  %v894 = vpop.f32.mrf.mxu0
  %895 = vdwg.mxu0
  %v896 = vunpack.c.l.bf16 %v865
  %v897 = vunpack.c.h.bf16 %v865
  %v898 = vadd.f32 %v896, %v880
  %v899 = vadd.f32 %v897, %v893
  %v900 = vld [vmem:[#allocation5] sm:$0xff]
  %v901 = vmul.f32 %v898, %v210
  %v902 = vmul.f32 %v899, %v211
  %v903 = vtanh.pop %v901
  %v904 = vtanh.pop %v902
  %v905 = vmul.f32 %v903, %v210
  %v906 = vmul.f32 %v904, %v211
  %v907 = vadd.f32 %v905, %v212
  %v908 = vadd.f32 %v906, %v213
  %910 = vrot.lane.b32.xlu0 %v900, 64
  %v911 = vpop.permute.xlu0 %910
  %v913 = vmul.f32 %v907, %v911
  %v914 = vmul.f32 %v907, %v908
  %916 = vrot.lane.b32.xlu0 %v914, 64
  %v917 = vpop.permute.xlu0 %916
  %v919 = vadd.f32 %v913, %v917
  %v920 = vtanh.pop %v919
  %v921 = vmul.f32 %v908, %v920
  %923 = vrot.lane.b32.xlu0 %v919, 64
  %v924 = vpop.permute.xlu0 %923
  %926 = vst.msk [vmem:[#allocation5] sm:$0xff] %vm257, %v924
  %928 = vrot.lane.b32.xlu0 %v921, 64
  %v929 = vpop.permute.xlu0 %928
  %931 = vst.msk [vmem:[#allocation4] sm:$0xff] %vm257, %v929
  %v932 = vld [vmem:[#allocation4] sm:$0xff]
  %v933 = vpack.c.bf16 %v932, %v932
  %934 = vmatpush.bf16.msra.mxu0 %v387
  %935 = vmatpush.bf16.msra.mxu0 %v385
  %936 = vmatpush.bf16.msra.mxu0 %v383
  %937 = vmatpush.bf16.msra.mxu0 %v381
  %938 = vmatpush.bf16.msra.mxu0 %v379
  %939 = vmatpush.bf16.msra.mxu0 %v377
  %940 = vmatpush.bf16.msra.mxu0 %v375
  %941 = vmatpush.bf16.msra.mxu0 %v373
  %942 = vmatmul.bf16.gmra.mxu0 %v933
  %v943 = vpop.f32.mrf.mxu0
  %v944 = vadd.f32 %v197, %v943
  %v945 = vpop.f32.mrf.mxu0
  %946 = vdwg.mxu0
  %947 = vmatpush.bf16.msra.mxu0 %v388
  %948 = vmatpush.bf16.msra.mxu0 %v386
  %949 = vmatpush.bf16.msra.mxu0 %v384
  %950 = vmatpush.bf16.msra.mxu0 %v382
  %951 = vmatpush.bf16.msra.mxu0 %v380
  %952 = vmatpush.bf16.msra.mxu0 %v378
  %953 = vmatpush.bf16.msra.mxu0 %v376
  %954 = vmatpush.bf16.msra.mxu0 %v374
  %955 = vmatmul.bf16.gmra.mxu0 %v933
  %v956 = vpop.f32.mrf.mxu0
  %v957 = vadd.f32 %v198, %v956
  %v958 = vpop.f32.mrf.mxu0
  %959 = vdwg.mxu0
  %v960 = vld [vmem:[#allocation6] sm:$0xff]
  %v961 = vmul.f32 %v944, %v210
  %v962 = vmul.f32 %v957, %v211
  %v963 = vtanh.pop %v961
  %v964 = vtanh.pop %v962
  %v965 = vmul.f32 %v963, %v210
  %v966 = vmul.f32 %v964, %v211
  %v967 = vadd.f32 %v965, %v212
  %v968 = vadd.f32 %v966, %v213
  %970 = vrot.lane.b32.xlu0 %v960, 64
  %v971 = vpop.permute.xlu0 %970
  %v973 = vmul.f32 %v967, %v971
  %v974 = vmul.f32 %v967, %v968
  %976 = vrot.lane.b32.xlu0 %v974, 64
  %v977 = vpop.permute.xlu0 %976
  %v979 = vadd.f32 %v973, %v977
  %v980 = vtanh.pop %v979
  %v981 = vmul.f32 %v968, %v980
  %983 = vrot.lane.b32.xlu0 %v979, 64
  %v984 = vpop.permute.xlu0 %983
  %986 = vst.msk [vmem:[#allocation6] sm:$0xff] %vm257, %v984
  %987 = vst.msk [vmem:[#allocation4] sm:$0xff] %vm458, %v981
  %v988 = vpack.c.bf16 %v981, %v981
  %990 = vrot.lane.b32.xlu0 %v988, 64
  %v991 = vpop.permute.xlu0 %990
  %s993 = scalar_lea.vmem [#allocation3], 16
  %994 = vst.msk [vmem:[%s993] sm:$0xf] %vm465, %v991
  %v995 = vld [vmem:[#allocation4] sm:$0xff]
  %s996 = scalar_lea.vmem [#allocation2], 40
  %v997 = vld [vmem:[%s996] sm:$0xff]
  %v998 = vpack.c.bf16 %v995, %v995
  %v1000 = vsel %vm257, %v998, 0
  %1002 = vmatpush.bf16.msra.mxu0 0
  %1003 = vmatpush.bf16.msra.mxu0 0
  %1004 = vmatpush.bf16.msra.mxu0 0
  %1005 = vmatpush.bf16.msra.mxu0 0
  %1006 = vmatpush.bf16.msra.mxu0 %v247
  %1007 = vmatpush.bf16.msra.mxu0 %v245
  %1008 = vmatpush.bf16.msra.mxu0 %v243
  %1009 = vmatpush.bf16.msra.mxu0 %v241
  %1010 = vmatmul.bf16.gmra.mxu0 %v1000
  %v1011 = vpop.f32.mrf.mxu0
  %v1012 = vadd.f32 0.0, %v1011
  %v1013 = vpop.f32.mrf.mxu0
  %1014 = vdwg.mxu0
  %1015 = vmatpush.bf16.msra.mxu0 0
  %1016 = vmatpush.bf16.msra.mxu0 0
  %1017 = vmatpush.bf16.msra.mxu0 0
  %1018 = vmatpush.bf16.msra.mxu0 0
  %1019 = vmatpush.bf16.msra.mxu0 %v248
  %1020 = vmatpush.bf16.msra.mxu0 %v246
  %1021 = vmatpush.bf16.msra.mxu0 %v244
  %1022 = vmatpush.bf16.msra.mxu0 %v242
  %1023 = vmatmul.bf16.gmra.mxu0 %v1000
  %v1024 = vpop.f32.mrf.mxu0
  %v1025 = vadd.f32 0.0, %v1024
  %v1026 = vpop.f32.mrf.mxu0
  %1027 = vdwg.mxu0
  %v1028 = vunpack.c.l.bf16 %v997
  %v1029 = vunpack.c.h.bf16 %v997
  %v1030 = vadd.f32 %v1028, %v1012
  %v1031 = vadd.f32 %v1029, %v1025
  %v1032 = vld [vmem:[#allocation5] sm:$0xff]
  %v1033 = vmul.f32 %v1030, %v210
  %v1034 = vmul.f32 %v1031, %v211
  %v1035 = vtanh.pop %v1033
  %v1036 = vtanh.pop %v1034
  %v1037 = vmul.f32 %v1035, %v210
  %v1038 = vmul.f32 %v1036, %v211
  %v1039 = vadd.f32 %v1037, %v212
  %v1040 = vadd.f32 %v1038, %v213
  %1042 = vrot.lane.b32.xlu0 %v1032, 64
  %v1043 = vpop.permute.xlu0 %1042
  %v1045 = vmul.f32 %v1039, %v1043
  %v1046 = vmul.f32 %v1039, %v1040
  %1048 = vrot.lane.b32.xlu0 %v1046, 64
  %v1049 = vpop.permute.xlu0 %1048
  %v1051 = vadd.f32 %v1045, %v1049
  %v1052 = vtanh.pop %v1051
  %v1053 = vmul.f32 %v1040, %v1052
  %1055 = vrot.lane.b32.xlu0 %v1051, 64
  %v1056 = vpop.permute.xlu0 %1055
  %1058 = vst.msk [vmem:[#allocation5] sm:$0xff] %vm257, %v1056
  %1060 = vrot.lane.b32.xlu0 %v1053, 64
  %v1061 = vpop.permute.xlu0 %1060
  %1063 = vst.msk [vmem:[#allocation4] sm:$0xff] %vm257, %v1061
  %v1064 = vld [vmem:[#allocation4] sm:$0xff]
  %v1065 = vpack.c.bf16 %v1064, %v1064
  %1066 = vmatpush.bf16.msra.mxu0 %v387
  %1067 = vmatpush.bf16.msra.mxu0 %v385
  %1068 = vmatpush.bf16.msra.mxu0 %v383
  %1069 = vmatpush.bf16.msra.mxu0 %v381
  %1070 = vmatpush.bf16.msra.mxu0 %v379
  %1071 = vmatpush.bf16.msra.mxu0 %v377
  %1072 = vmatpush.bf16.msra.mxu0 %v375
  %1073 = vmatpush.bf16.msra.mxu0 %v373
  %1074 = vmatmul.bf16.gmra.mxu0 %v1065
  %v1075 = vpop.f32.mrf.mxu0
  %v1076 = vadd.f32 %v197, %v1075
  %v1077 = vpop.f32.mrf.mxu0
  %1078 = vdwg.mxu0
  %1079 = vmatpush.bf16.msra.mxu0 %v388
  %1080 = vmatpush.bf16.msra.mxu0 %v386
  %1081 = vmatpush.bf16.msra.mxu0 %v384
  %1082 = vmatpush.bf16.msra.mxu0 %v382
  %1083 = vmatpush.bf16.msra.mxu0 %v380
  %1084 = vmatpush.bf16.msra.mxu0 %v378
  %1085 = vmatpush.bf16.msra.mxu0 %v376
  %1086 = vmatpush.bf16.msra.mxu0 %v374
  %1087 = vmatmul.bf16.gmra.mxu0 %v1065
  %v1088 = vpop.f32.mrf.mxu0
  %v1089 = vadd.f32 %v198, %v1088
  %v1090 = vpop.f32.mrf.mxu0
  %1091 = vdwg.mxu0
  %v1092 = vld [vmem:[#allocation6] sm:$0xff]
  %v1093 = vmul.f32 %v1076, %v210
  %v1094 = vmul.f32 %v1089, %v211
  %v1095 = vtanh.pop %v1093
  %v1096 = vtanh.pop %v1094
  %v1097 = vmul.f32 %v1095, %v210
  %v1098 = vmul.f32 %v1096, %v211
  %v1099 = vadd.f32 %v1097, %v212
  %v1100 = vadd.f32 %v1098, %v213
  %1102 = vrot.lane.b32.xlu0 %v1092, 64
  %v1103 = vpop.permute.xlu0 %1102
  %v1105 = vmul.f32 %v1099, %v1103
  %v1106 = vmul.f32 %v1099, %v1100
  %1108 = vrot.lane.b32.xlu0 %v1106, 64
  %v1109 = vpop.permute.xlu0 %1108
  %v1111 = vadd.f32 %v1105, %v1109
  %v1112 = vtanh.pop %v1111
  %v1113 = vmul.f32 %v1100, %v1112
  %1115 = vrot.lane.b32.xlu0 %v1111, 64
  %v1116 = vpop.permute.xlu0 %1115
  %1118 = vst.msk [vmem:[#allocation6] sm:$0xff] %vm257, %v1116
  %1119 = vst.msk [vmem:[#allocation4] sm:$0xff] %vm458, %v1113
  %v1120 = vpack.c.bf16 %v1113, %v1113
  %1122 = vrot.lane.b32.xlu0 %v1120, 64
  %v1123 = vpop.permute.xlu0 %1122
  %s1125 = scalar_lea.vmem [#allocation3], 20
  %1126 = vst.msk [vmem:[%s1125] sm:$0xf] %vm465, %v1123
  %v1127 = vld [vmem:[#allocation4] sm:$0xff]
  %s1128 = scalar_lea.vmem [#allocation2], 48
  %v1129 = vld [vmem:[%s1128] sm:$0xff]
  %v1130 = vpack.c.bf16 %v1127, %v1127
  %v1132 = vsel %vm257, %v1130, 0
  %1134 = vmatpush.bf16.msra.mxu0 0
  %1135 = vmatpush.bf16.msra.mxu0 0
  %1136 = vmatpush.bf16.msra.mxu0 0
  %1137 = vmatpush.bf16.msra.mxu0 0
  %1138 = vmatpush.bf16.msra.mxu0 %v247
  %1139 = vmatpush.bf16.msra.mxu0 %v245
  %1140 = vmatpush.bf16.msra.mxu0 %v243
  %1141 = vmatpush.bf16.msra.mxu0 %v241
  %1142 = vmatmul.bf16.gmra.mxu0 %v1132
  %v1143 = vpop.f32.mrf.mxu0
  %v1144 = vadd.f32 0.0, %v1143
  %v1145 = vpop.f32.mrf.mxu0
  %1146 = vdwg.mxu0
  %1147 = vmatpush.bf16.msra.mxu0 0
  %1148 = vmatpush.bf16.msra.mxu0 0
  %1149 = vmatpush.bf16.msra.mxu0 0
  %1150 = vmatpush.bf16.msra.mxu0 0
  %1151 = vmatpush.bf16.msra.mxu0 %v248
  %1152 = vmatpush.bf16.msra.mxu0 %v246
  %1153 = vmatpush.bf16.msra.mxu0 %v244
  %1154 = vmatpush.bf16.msra.mxu0 %v242
  %1155 = vmatmul.bf16.gmra.mxu0 %v1132
  %v1156 = vpop.f32.mrf.mxu0
  %v1157 = vadd.f32 0.0, %v1156
  %v1158 = vpop.f32.mrf.mxu0
  %1159 = vdwg.mxu0
  %v1160 = vunpack.c.l.bf16 %v1129
  %v1161 = vunpack.c.h.bf16 %v1129
  %v1162 = vadd.f32 %v1160, %v1144
  %v1163 = vadd.f32 %v1161, %v1157
  %v1164 = vld [vmem:[#allocation5] sm:$0xff]
  %v1165 = vmul.f32 %v1162, %v210
  %v1166 = vmul.f32 %v1163, %v211
  %v1167 = vtanh.pop %v1165
  %v1168 = vtanh.pop %v1166
  %v1169 = vmul.f32 %v1167, %v210
  %v1170 = vmul.f32 %v1168, %v211
  %v1171 = vadd.f32 %v1169, %v212
  %v1172 = vadd.f32 %v1170, %v213
  %1174 = vrot.lane.b32.xlu0 %v1164, 64
  %v1175 = vpop.permute.xlu0 %1174
  %v1177 = vmul.f32 %v1171, %v1175
  %v1178 = vmul.f32 %v1171, %v1172
  %1180 = vrot.lane.b32.xlu0 %v1178, 64
  %v1181 = vpop.permute.xlu0 %1180
  %v1183 = vadd.f32 %v1177, %v1181
  %v1184 = vtanh.pop %v1183
  %v1185 = vmul.f32 %v1172, %v1184
  %1187 = vrot.lane.b32.xlu0 %v1183, 64
  %v1188 = vpop.permute.xlu0 %1187
  %1190 = vst.msk [vmem:[#allocation5] sm:$0xff] %vm257, %v1188
  %1192 = vrot.lane.b32.xlu0 %v1185, 64
  %v1193 = vpop.permute.xlu0 %1192
  %1195 = vst.msk [vmem:[#allocation4] sm:$0xff] %vm257, %v1193
  %v1196 = vld [vmem:[#allocation4] sm:$0xff]
  %v1197 = vpack.c.bf16 %v1196, %v1196
  %1198 = vmatpush.bf16.msra.mxu0 %v387
  %1199 = vmatpush.bf16.msra.mxu0 %v385
  %1200 = vmatpush.bf16.msra.mxu0 %v383
  %1201 = vmatpush.bf16.msra.mxu0 %v381
  %1202 = vmatpush.bf16.msra.mxu0 %v379
  %1203 = vmatpush.bf16.msra.mxu0 %v377
  %1204 = vmatpush.bf16.msra.mxu0 %v375
  %1205 = vmatpush.bf16.msra.mxu0 %v373
  %1206 = vmatmul.bf16.gmra.mxu0 %v1197
  %v1207 = vpop.f32.mrf.mxu0
  %v1208 = vadd.f32 %v197, %v1207
  %v1209 = vpop.f32.mrf.mxu0
  %1210 = vdwg.mxu0
  %1211 = vmatpush.bf16.msra.mxu0 %v388
  %1212 = vmatpush.bf16.msra.mxu0 %v386
  %1213 = vmatpush.bf16.msra.mxu0 %v384
  %1214 = vmatpush.bf16.msra.mxu0 %v382
  %1215 = vmatpush.bf16.msra.mxu0 %v380
  %1216 = vmatpush.bf16.msra.mxu0 %v378
  %1217 = vmatpush.bf16.msra.mxu0 %v376
  %1218 = vmatpush.bf16.msra.mxu0 %v374
  %1219 = vmatmul.bf16.gmra.mxu0 %v1197
  %v1220 = vpop.f32.mrf.mxu0
  %v1221 = vadd.f32 %v198, %v1220
  %v1222 = vpop.f32.mrf.mxu0
  %1223 = vdwg.mxu0
  %v1224 = vld [vmem:[#allocation6] sm:$0xff]
  %v1225 = vmul.f32 %v1208, %v210
  %v1226 = vmul.f32 %v1221, %v211
  %v1227 = vtanh.pop %v1225
  %v1228 = vtanh.pop %v1226
  %v1229 = vmul.f32 %v1227, %v210
  %v1230 = vmul.f32 %v1228, %v211
  %v1231 = vadd.f32 %v1229, %v212
  %v1232 = vadd.f32 %v1230, %v213
  %1234 = vrot.lane.b32.xlu0 %v1224, 64
  %v1235 = vpop.permute.xlu0 %1234
  %v1237 = vmul.f32 %v1231, %v1235
  %v1238 = vmul.f32 %v1231, %v1232
  %1240 = vrot.lane.b32.xlu0 %v1238, 64
  %v1241 = vpop.permute.xlu0 %1240
  %v1243 = vadd.f32 %v1237, %v1241
  %v1244 = vtanh.pop %v1243
  %v1245 = vmul.f32 %v1232, %v1244
  %1247 = vrot.lane.b32.xlu0 %v1243, 64
  %v1248 = vpop.permute.xlu0 %1247
  %1250 = vst.msk [vmem:[#allocation6] sm:$0xff] %vm257, %v1248
  %1251 = vst.msk [vmem:[#allocation4] sm:$0xff] %vm458, %v1245
  %v1252 = vpack.c.bf16 %v1245, %v1245
  %1254 = vrot.lane.b32.xlu0 %v1252, 64
  %v1255 = vpop.permute.xlu0 %1254
  %s1257 = scalar_lea.vmem [#allocation3], 24
  %1258 = vst.msk [vmem:[%s1257] sm:$0xf] %vm465, %v1255
  %v1259 = vld [vmem:[#allocation4] sm:$0xff]
  %s1260 = scalar_lea.vmem [#allocation2], 56
  %v1261 = vld [vmem:[%s1260] sm:$0xff]
  %v1262 = vpack.c.bf16 %v1259, %v1259
  %v1264 = vsel %vm257, %v1262, 0
  %1266 = vmatpush.bf16.msra.mxu0 0
  %1267 = vmatpush.bf16.msra.mxu0 0
  %1268 = vmatpush.bf16.msra.mxu0 0
  %1269 = vmatpush.bf16.msra.mxu0 0
  %1270 = vmatpush.bf16.msra.mxu0 %v247
  %1271 = vmatpush.bf16.msra.mxu0 %v245
  %1272 = vmatpush.bf16.msra.mxu0 %v243
  %1273 = vmatpush.bf16.msra.mxu0 %v241
  %1274 = vmatmul.bf16.gmra.mxu0 %v1264
  %v1275 = vpop.f32.mrf.mxu0
  %v1276 = vadd.f32 0.0, %v1275
  %v1277 = vpop.f32.mrf.mxu0
  %1278 = vdwg.mxu0
  %1279 = vmatpush.bf16.msra.mxu0 0
  %1280 = vmatpush.bf16.msra.mxu0 0
  %1281 = vmatpush.bf16.msra.mxu0 0
  %1282 = vmatpush.bf16.msra.mxu0 0
  %1283 = vmatpush.bf16.msra.mxu0 %v248
  %1284 = vmatpush.bf16.msra.mxu0 %v246
  %1285 = vmatpush.bf16.msra.mxu0 %v244
  %1286 = vmatpush.bf16.msra.mxu0 %v242
  %1287 = vmatmul.bf16.gmra.mxu0 %v1264
  %v1288 = vpop.f32.mrf.mxu0
  %v1289 = vadd.f32 0.0, %v1288
  %v1290 = vpop.f32.mrf.mxu0
  %1291 = vdwg.mxu0
  %v1292 = vunpack.c.l.bf16 %v1261
  %v1293 = vunpack.c.h.bf16 %v1261
  %v1294 = vadd.f32 %v1292, %v1276
  %v1295 = vadd.f32 %v1293, %v1289
  %v1296 = vld [vmem:[#allocation5] sm:$0xff]
  %v1297 = vmul.f32 %v1294, %v210
  %v1298 = vmul.f32 %v1295, %v211
  %v1299 = vtanh.pop %v1297
  %v1300 = vtanh.pop %v1298
  %v1301 = vmul.f32 %v1299, %v210
  %v1302 = vmul.f32 %v1300, %v211
  %v1303 = vadd.f32 %v1301, %v212
  %v1304 = vadd.f32 %v1302, %v213
  %1306 = vrot.lane.b32.xlu0 %v1296, 64
  %v1307 = vpop.permute.xlu0 %1306
  %v1309 = vmul.f32 %v1303, %v1307
  %v1310 = vmul.f32 %v1303, %v1304
  %1312 = vrot.lane.b32.xlu0 %v1310, 64
  %v1313 = vpop.permute.xlu0 %1312
  %v1315 = vadd.f32 %v1309, %v1313
  %v1316 = vtanh.pop %v1315
  %v1317 = vmul.f32 %v1304, %v1316
  %1319 = vrot.lane.b32.xlu0 %v1315, 64
  %v1320 = vpop.permute.xlu0 %1319
  %1322 = vst.msk [vmem:[#allocation5] sm:$0xff] %vm257, %v1320
  %1324 = vrot.lane.b32.xlu0 %v1317, 64
  %v1325 = vpop.permute.xlu0 %1324
  %1327 = vst.msk [vmem:[#allocation4] sm:$0xff] %vm257, %v1325
  %v1328 = vld [vmem:[#allocation4] sm:$0xff]
  %v1329 = vpack.c.bf16 %v1328, %v1328
  %1330 = vmatpush.bf16.msra.mxu0 %v387
  %1331 = vmatpush.bf16.msra.mxu0 %v385
  %1332 = vmatpush.bf16.msra.mxu0 %v383
  %1333 = vmatpush.bf16.msra.mxu0 %v381
  %1334 = vmatpush.bf16.msra.mxu0 %v379
  %1335 = vmatpush.bf16.msra.mxu0 %v377
  %1336 = vmatpush.bf16.msra.mxu0 %v375
  %1337 = vmatpush.bf16.msra.mxu0 %v373
  %1338 = vmatmul.bf16.gmra.mxu0 %v1329
  %v1339 = vpop.f32.mrf.mxu0
  %v1340 = vadd.f32 %v197, %v1339
  %v1341 = vpop.f32.mrf.mxu0
  %1342 = vdwg.mxu0
  %1343 = vmatpush.bf16.msra.mxu0 %v388
  %1344 = vmatpush.bf16.msra.mxu0 %v386
  %1345 = vmatpush.bf16.msra.mxu0 %v384
  %1346 = vmatpush.bf16.msra.mxu0 %v382
  %1347 = vmatpush.bf16.msra.mxu0 %v380
  %1348 = vmatpush.bf16.msra.mxu0 %v378
  %1349 = vmatpush.bf16.msra.mxu0 %v376
  %1350 = vmatpush.bf16.msra.mxu0 %v374
  %1351 = vmatmul.bf16.gmra.mxu0 %v1329
  %v1352 = vpop.f32.mrf.mxu0
  %v1353 = vadd.f32 %v198, %v1352
  %v1354 = vpop.f32.mrf.mxu0
  %1355 = vdwg.mxu0
  %v1356 = vld [vmem:[#allocation6] sm:$0xff]
  %v1357 = vmul.f32 %v1340, %v210
  %v1358 = vmul.f32 %v1353, %v211
  %v1359 = vtanh.pop %v1357
  %v1360 = vtanh.pop %v1358
  %v1361 = vmul.f32 %v1359, %v210
  %v1362 = vmul.f32 %v1360, %v211
  %v1363 = vadd.f32 %v1361, %v212
  %v1364 = vadd.f32 %v1362, %v213
  %1366 = vrot.lane.b32.xlu0 %v1356, 64
  %v1367 = vpop.permute.xlu0 %1366
  %v1369 = vmul.f32 %v1363, %v1367
  %v1370 = vmul.f32 %v1363, %v1364
  %1372 = vrot.lane.b32.xlu0 %v1370, 64
  %v1373 = vpop.permute.xlu0 %1372
  %v1375 = vadd.f32 %v1369, %v1373
  %v1376 = vtanh.pop %v1375
  %v1377 = vmul.f32 %v1364, %v1376
  %1379 = vrot.lane.b32.xlu0 %v1375, 64
  %v1380 = vpop.permute.xlu0 %1379
  %1382 = vst.msk [vmem:[#allocation6] sm:$0xff] %vm257, %v1380
  %1383 = vst.msk [vmem:[#allocation4] sm:$0xff] %vm458, %v1377
  %v1384 = vpack.c.bf16 %v1377, %v1377
  %1386 = vrot.lane.b32.xlu0 %v1384, 64
  %v1387 = vpop.permute.xlu0 %1386
  %s1389 = scalar_lea.vmem [#allocation3], 28
  %1390 = vst.msk [vmem:[%s1389] sm:$0xf] %vm465, %v1387
  %v1391 = vld [vmem:[#allocation3] sm:$0xf]
  %v1392 = vld [vmem:[#allocation3 + $0x4] sm:$0xf]
  %v1393 = vld [vmem:[#allocation3 + $0x8] sm:$0xf]
  %v1394 = vld [vmem:[#allocation3 + $0xc] sm:$0xf]
  %v1395 = vld [vmem:[#allocation3 + $0x10] sm:$0xf]
  %v1396 = vld [vmem:[#allocation3 + $0x14] sm:$0xf]
  %v1397 = vld [vmem:[#allocation3 + $0x18] sm:$0xf]
  %v1398 = vld [vmem:[#allocation3 + $0x1c] sm:$0xf]
  %v1399 = vld [vmem:[%s6] sm:$0xf]
  %v1400 = vld [vmem:[%s6 + $0x4] sm:$0xf]
  %v1401 = vld [vmem:[%s6 + $0x8] sm:$0xf]
  %v1402 = vld [vmem:[%s6 + $0xc] sm:$0xf]
  %v1403 = vld [vmem:[%s6 + $0x10] sm:$0xf]
  %v1404 = vld [vmem:[%s6 + $0x14] sm:$0xf]
  %v1405 = vld [vmem:[%s6 + $0x18] sm:$0xf]
  %v1406 = vld [vmem:[%s6 + $0x1c] sm:$0xf]
  %v1407 = vld [vmem:[%s7] sm:$0x1]
  %v1409 = vperm.slane %v1407, 0
  %v1419 = vunpack.c.l.b16 %v1391
  %v1420 = vunpack.c.l.b16 %v1392
  %v1421 = vunpack.c.l.b16 %v1393
  %v1422 = vunpack.c.l.b16 %v1394
  %v1423 = vunpack.c.l.b16 %v1395
  %v1424 = vunpack.c.l.b16 %v1396
  %v1425 = vunpack.c.l.b16 %v1397
  %v1426 = vunpack.c.l.b16 %v1398
  %v1427 = vpack.c.b16 %v1420, %v1419
  %v1428 = vpack.c.b16 %v1422, %v1421
  %v1429 = vpack.c.b16 %v1424, %v1423
  %v1430 = vpack.c.b16 %v1426, %v1425
  %v1439 = vunpack.c.l.b16 %v1399
  %v1440 = vunpack.c.l.b16 %v1400
  %v1441 = vunpack.c.l.b16 %v1401
  %v1442 = vunpack.c.l.b16 %v1402
  %v1443 = vunpack.c.l.b16 %v1403
  %v1444 = vunpack.c.l.b16 %v1404
  %v1445 = vunpack.c.l.b16 %v1405
  %v1446 = vunpack.c.l.b16 %v1406
  %v1447 = vpack.c.b16 %v1440, %v1439
  %v1448 = vpack.c.b16 %v1442, %v1441
  %v1449 = vpack.c.b16 %v1444, %v1443
  %v1450 = vpack.c.b16 %v1446, %v1445
  %v1456 = vsel %vm257, %v1427, 0
  %v1459 = vsel %vm257, %v1428, 0
  %v1462 = vsel %vm257, %v1429, 0
  %v1465 = vsel %vm257, %v1430, 0
  %1467 = vmatpush.bf16.msra.mxu0 0
  %1468 = vmatpush.bf16.msra.mxu0 0
  %1469 = vmatpush.bf16.msra.mxu0 0
  %1470 = vmatpush.bf16.msra.mxu0 0
  %1471 = vmatpush.bf16.msra.mxu0 %v1450
  %1472 = vmatpush.bf16.msra.mxu0 %v1449
  %1473 = vmatpush.bf16.msra.mxu0 %v1448
  %1474 = vmatpush.bf16.msra.mxu0 %v1447
  %1475 = vmatmul.bf16.gmra.mxu0 %v1456
  %v1476 = vpop.f32.mrf.mxu0
  %v1477 = vadd.f32 %v1409, %v1476
  %v1478 = vpop.f32.mrf.mxu0
  %v1479 = vadd.f32 %v1409, %v1478
  %1480 = vmatmul.bf16.gmra.mxu0 %v1459
  %v1481 = vpop.f32.mrf.mxu0
  %v1482 = vadd.f32 %v1409, %v1481
  %v1483 = vpop.f32.mrf.mxu0
  %v1484 = vadd.f32 %v1409, %v1483
  %1485 = vmatmul.bf16.gmra.mxu0 %v1462
  %v1486 = vpop.f32.mrf.mxu0
  %v1487 = vadd.f32 %v1409, %v1486
  %v1488 = vpop.f32.mrf.mxu0
  %v1489 = vadd.f32 %v1409, %v1488
  %1490 = vmatmul.bf16.gmra.mxu0 %v1465
  %v1491 = vpop.f32.mrf.mxu0
  %v1492 = vadd.f32 %v1409, %v1491
  %v1493 = vpop.f32.mrf.mxu0
  %v1494 = vadd.f32 %v1409, %v1493
  %1495 = vdwg.mxu0
  %v1496 = vmax.f32 %v1477, 0.0
  %v1497 = vmax.f32 %v1479, 0.0
  %v1498 = vmax.f32 %v1482, 0.0
  %v1499 = vmax.f32 %v1484, 0.0
  %v1500 = vmax.f32 %v1487, 0.0
  %v1501 = vmax.f32 %v1489, 0.0
  %v1502 = vmax.f32 %v1492, 0.0
  %v1503 = vmax.f32 %v1494, 0.0
  %v1504 = vld [vmem:[%s8] sm:$0x1]
  %v1506 = vperm.slane %v1504, 0
  %v1508 = vmul.f32 %v1496, %v1506
  %v1509 = vmul.f32 %v1497, %v1506
  %v1510 = vmul.f32 %v1498, %v1506
  %v1511 = vmul.f32 %v1499, %v1506
  %v1512 = vmul.f32 %v1500, %v1506
  %v1513 = vmul.f32 %v1501, %v1506
  %v1514 = vmul.f32 %v1502, %v1506
  %v1515 = vmul.f32 %v1503, %v1506
  %vm1516 = vcmask 130048
  %v1517 = vsel %vm1516, %v1508, 0.0
  %1518 = vadd.xlane.f32.xlu0 %v1517
  %v1519 = vpop.xlane.xlu0 %1518
  %v1520 = vsel %vm1516, %v1509, 0.0
  %1521 = vadd.xlane.f32.xlu0 %v1520
  %v1522 = vpop.xlane.xlu0 %1521
  %v1523 = vsel %vm1516, %v1510, 0.0
  %1524 = vadd.xlane.f32.xlu0 %v1523
  %v1525 = vpop.xlane.xlu0 %1524
  %v1526 = vsel %vm1516, %v1511, 0.0
  %1527 = vadd.xlane.f32.xlu0 %v1526
  %v1528 = vpop.xlane.xlu0 %1527
  %v1529 = vsel %vm1516, %v1512, 0.0
  %1530 = vadd.xlane.f32.xlu0 %v1529
  %v1531 = vpop.xlane.xlu0 %1530
  %v1532 = vsel %vm1516, %v1513, 0.0
  %1533 = vadd.xlane.f32.xlu0 %v1532
  %v1534 = vpop.xlane.xlu0 %1533
  %v1535 = vsel %vm1516, %v1514, 0.0
  %1536 = vadd.xlane.f32.xlu0 %v1535
  %v1537 = vpop.xlane.xlu0 %1536
  %v1538 = vsel %vm1516, %v1515, 0.0
  %1539 = vadd.xlane.f32.xlu0 %v1538
  %v1540 = vpop.xlane.xlu0 %1539
  %v1541 = vld [vmem:[#allocation7] sm:$0x1]
  %v1543 = vperm.slane %v1541, 0
  %1544 = vset.pattern.permute.xlu0 0
  %1545 = vperm.xlu0 %1544, %v1543
  %v1546 = vpop.permute.xlu0 %1545
  %v1548 = vadd.f32 %v1519, %v1546
  %v1549 = vadd.f32 %v1522, %v1546
  %v1550 = vadd.f32 %v1525, %v1546
  %v1551 = vadd.f32 %v1528, %v1546
  %v1552 = vadd.f32 %v1531, %v1546
  %v1553 = vadd.f32 %v1534, %v1546
  %v1554 = vadd.f32 %v1537, %v1546
  %v1555 = vadd.f32 %v1540, %v1546
  %v1564 = vperm.slane %v1548, %v202
  %v1565 = vperm.slane %v1549, %v202
  %v1566 = vperm.slane %v1550, %v202
  %v1567 = vperm.slane %v1551, %v202
  %v1568 = vperm.slane %v1552, %v202
  %v1569 = vperm.slane %v1553, %v202
  %v1570 = vperm.slane %v1554, %v202
  %v1571 = vperm.slane %v1555, %v202
  %vm1572 = vcmask 1041409
  %v1573 = vsel %vm1572, %v1565, %v1564
  %vm1574 = vcmask 1042434
  %v1575 = vsel %vm1574, %v1566, %v1573
  %vm1576 = vcmask 1043459
  %v1577 = vsel %vm1576, %v1567, %v1575
  %vm1578 = vcmask 1044484
  %v1579 = vsel %vm1578, %v1568, %v1577
  %vm1580 = vcmask 1045509
  %v1581 = vsel %vm1580, %v1569, %v1579
  %vm1582 = vcmask 1046534
  %v1583 = vsel %vm1582, %v1570, %v1581
  %vm1584 = vcmask 1047559
  %v1585 = vsel %vm1584, %v1571, %v1583
  %1587 = vxpose.xlu0.b32.start [1/16] %v1585, 128
  %1588 = vxpose.xlu0.b32.cont [2/16] 0.0, 128
  %1589 = vxpose.xlu0.b32.cont [3/16] 0.0, 128
  %1590 = vxpose.xlu0.b32.cont [4/16] 0.0, 128
  %1591 = vxpose.xlu0.b32.cont [5/16] 0.0, 128
  %1592 = vxpose.xlu0.b32.cont [6/16] 0.0, 128
  %1593 = vxpose.xlu0.b32.cont [7/16] 0.0, 128
  %1594 = vxpose.xlu0.b32.cont [8/16] 0.0, 128
  %1595 = vxpose.xlu0.b32.cont [9/16] 0.0, 128
  %1596 = vxpose.xlu0.b32.cont [10/16] 0.0, 128
  %1597 = vxpose.xlu0.b32.cont [11/16] 0.0, 128
  %1598 = vxpose.xlu0.b32.cont [12/16] 0.0, 128
  %1599 = vxpose.xlu0.b32.cont [13/16] 0.0, 128
  %1600 = vxpose.xlu0.b32.cont [14/16] 0.0, 128
  %1601 = vxpose.xlu0.b32.cont [15/16] 0.0, 128
  %1602 = vxpose.xlu0.b32.end [16/16] 0.0, 128
  %v1603 = vpop.trf.xlu0
  %v1604 = vpop.trf.xlu0
  %v1605 = vpop.trf.xlu0
  %v1606 = vpop.trf.xlu0
  %v1607 = vpop.trf.xlu0
  %v1608 = vpop.trf.xlu0
  %v1609 = vpop.trf.xlu0
  %v1610 = vpop.trf.xlu0
  %v1611 = vpop.trf.xlu0
  %v1612 = vpop.trf.xlu0
  %v1613 = vpop.trf.xlu0
  %v1614 = vpop.trf.xlu0
  %v1615 = vpop.trf.xlu0
  %v1616 = vpop.trf.xlu0
  %v1617 = vpop.trf.xlu0
  %v1618 = vpop.trf.xlu0
  %vm1619 = vcmask 64512
  %1620 = vst.msk [vmem:[%s10] sm:$0xff] %vm1619, %v1603
  // Predicated region
  $region46: #{ts_rnn_forward.1} parent=0 // pred_check
    _
  $region47: #{ts_rnn_forward.1} parent=0 // pred_check_branch
    %1622 = sbr.rel (0) target = $region49
  $region48: #{ts_rnn_forward.1} parent=0 // pred_region
    _
  $region49: #{ts_rnn_forward.1} parent=0 // pred_fallthru
    _
  // Predicated region
  $region50: #{ts_rnn_forward.1} parent=0 // pred_check
    _
  $region51: #{ts_rnn_forward.1} parent=0 // pred_check_branch
    %1624 = sbr.rel (0) target = $region53
  $region52: #{ts_rnn_forward.1} parent=0 // pred_region
    _
  $region53: #{ts_rnn_forward.1} parent=0 // pred_fallthru
    _

</llo_original>
